<compile_context>
chip_gen: v7x
topology: tpu7x:2x2x1
jax: 0.10.0
libtpu: 0.0.40
codegen_flags: <defaults>
</compile_context>

<pallas_src>
import functools

import numpy as np
import jax
import jax.numpy as jnp
from jax.experimental import pallas as pl
from jax.experimental.pallas import tpu as pltpu

_INV_SQRT2 = 0.7071067811865476


def _erf_f32(x):
    # Abramowitz & Stegun 7.1.26 rational approximation, |err| <= 1.5e-7.
    # NOTE: exact divide (no pl.reciprocal(approx=True)) — the approximate
    # reciprocal previously blew the 1e-3 end-to-end margin.
    p = 0.3275911
    a1, a2, a3, a4, a5 = (0.254829592, -0.284496736, 1.421413741,
                          -1.453152027, 1.061405429)
    sign = jnp.where(x >= 0.0, 1.0, -1.0)
    ax = jnp.abs(x)
    t = 1.0 / (1.0 + p * ax)
    poly = ((((a5 * t + a4) * t + a3) * t + a2) * t + a1) * t
    return sign * (1.0 - poly * jnp.exp(-ax * ax))


def _gelu_exact(x):
    # nn.GELU() default (approximate='none'): 0.5*x*(1+erf(x/sqrt(2)))
    return 0.5 * x * (1.0 + _erf_f32(x * _INV_SQRT2))


# ----------------------------------------------------------------------------
# Fused kernel: conv0+GELU -> conv1+GELU -> conv2, all in VMEM.
# ----------------------------------------------------------------------------
def _disc_kernel(p0_ref, w0_ref, b0_ref,
                 s1_ref, w1_ref, b1_ref,
                 s2_ref, w2_ref, b2_ref,
                 o_ref, p1_ref, p2_ref, *, m1, m2, c0, c1):
    f32 = jnp.float32

    # ---- layer 0: conv0 (im2col patches built host-side) + GELU ------------
    a0 = jnp.dot(p0_ref[...], w0_ref[...], preferred_element_type=f32)
    a0 = _gelu_exact(a0 + b0_ref[...])                         # (M0, 32)

    # ---- layer 1: one gather matmul + one full-K (288) weight matmul -------
    # s1 rows are tap-major: rows [t*M1, (t+1)*M1) hold the 0/1 selection of
    # the t-th shifted stride-2 window (zero rows encode padding).
    g1 = jnp.dot(s1_ref[...], a0, preferred_element_type=f32)  # (9*M1, 32)
    for t in range(9):                                         # static unroll
        p1_ref[:, t * c0:(t + 1) * c0] = g1[t * m1:(t + 1) * m1, :]
    a1 = jnp.dot(p1_ref[...], w1_ref[...], preferred_element_type=f32)
    a1 = _gelu_exact(a1 + b1_ref[...])                         # (M1, 64)

    # ---- layer 2: same scheme, full K = 576, no activation -----------------
    g2 = jnp.dot(s2_ref[...], a1, preferred_element_type=f32)  # (9*M2, 64)
    for t in range(9):
        p2_ref[:, t * c1:(t + 1) * c1] = g2[t * m2:(t + 1) * m2, :]
    out = jnp.dot(p2_ref[...], w2_ref[...], preferred_element_type=f32)
    o_ref[...] = (out + b2_ref[...]).astype(o_ref.dtype)       # lane-dense (M2, 128)


# ----------------------------------------------------------------------------
# Host-side glue (trace-time constants, tiny shapes).
# ----------------------------------------------------------------------------
def _conv_out(sz, k=3, s=2, p=1):
    return (sz + 2 * p - k) // s + 1


def _im2col(x_nhwc, k=3, s=2, p=1):
    n, h, w, c = x_nhwc.shape
    ho, wo = _conv_out(h, k, s, p), _conv_out(w, k, s, p)
    xp = jnp.pad(x_nhwc, ((0, 0), (p, p), (p, p), (0, 0)))
    cols = []
    for ky in range(k):
        for kx in range(k):
            cols.append(xp[:, ky:ky + s * ho:s, kx:kx + s * wo:s, :])
    patches = jnp.stack(cols, axis=3)            # (N, Ho, Wo, k*k, C)
    return patches.reshape(n * ho * wo, k * k * c), (n, ho, wo)


def _selection_mats(n, h_in, w_in, h_out, w_out, k=3, s=2, p=1):
    # Constant 0/1 row-selection matrices, stacked tap-major: row t*M_out + m
    # selects input row (s*i-p+ky, s*j-p+kx) for output pixel m=(b,i,j) and
    # tap t=(ky,kx); all-zero rows encode the zero padding (GELU(0)=0 safe).
    m_in, m_out = n * h_in * w_in, n * h_out * w_out
    sel = np.zeros((k * k, m_out, m_in), np.float32)
    for t in range(k * k):
        ky, kx = t // k, t % k
        for b in range(n):
            for i in range(h_out):
                for j in range(w_out):
                    y, x = s * i - p + ky, s * j - p + kx
                    if 0 <= y < h_in and 0 <= x < w_in:
                        sel[t, b * h_out * w_out + i * w_out + j,
                            b * h_in * w_in + y * w_in + x] = 1.0
    return sel.reshape(k * k * m_out, m_in)


def _w_mat(w_oihw):
    # (Cout,Cin,kH,kW) -> (kH,kW,Cin,Cout) -> (kH*kW*Cin, Cout); matches the
    # (ky,kx,cin) tap/channel ordering used by _im2col and the in-kernel
    # patch repack.
    cout, cin, kh, kw = w_oihw.shape
    return jnp.transpose(w_oihw, (2, 3, 1, 0)).reshape(kh * kw * cin, cout)


def discriminator_forward(x_nchw, params):
    (cw0, cb0), (cw1, cb1), (cw2, cb2) = params
    n = x_nchw.shape[0]
    x_nhwc = jnp.transpose(x_nchw, (0, 2, 3, 1))             # NCHW -> NHWC

    patches0, (_, h0, w0) = _im2col(x_nhwc)                  # (M0, 9*Cin)
    h1, w1 = _conv_out(h0), _conv_out(w0)
    h2, w2 = _conv_out(h1), _conv_out(w1)
    m1, m2 = n * h1 * w1, n * h2 * w2
    c0, c1, c2 = cw0.shape[0], cw1.shape[0], cw2.shape[0]    # 32, 64, 128

    s1 = jnp.asarray(_selection_mats(n, h0, w0, h1, w1))     # (9*M1, M0)
    s2 = jnp.asarray(_selection_mats(n, h1, w1, h2, w2))     # (9*M2, M1)
    wm0, wm1, wm2 = _w_mat(cw0), _w_mat(cw1), _w_mat(cw2)
    br0, br1, br2 = cb0.reshape(1, -1), cb1.reshape(1, -1), cb2.reshape(1, -1)

    kernel = functools.partial(_disc_kernel, m1=m1, m2=m2, c0=c0, c1=c1)
    full = lambda shape: pl.BlockSpec(shape, lambda i: (0, 0))

    out = pl.pallas_call(
        kernel,
        out_shape=jax.ShapeDtypeStruct((m2, c2), x_nchw.dtype),
        grid=(1,),   # whole problem (<1 MiB of operands) -> single VMEM block
        in_specs=[full(patches0.shape), full(wm0.shape), full(br0.shape),
                  full(s1.shape), full(wm1.shape), full(br1.shape),
                  full(s2.shape), full(wm2.shape), full(br2.shape)],
        out_specs=full((m2, c2)),
        scratch_shapes=[pltpu.VMEM((m1, 9 * c0), jnp.float32),   # im2col of a0
                        pltpu.VMEM((m2, 9 * c1), jnp.float32)],  # im2col of a1
        # TODO(synk): at realistic image sizes, drop the O(H^4) selection
        # matrices in favour of strided in-VMEM window reads, tile output rows
        # over a leading "parallel" grid axis (megacore), single-buffer the
        # loop-invariant weights, and size tiles against v7x's 64 MiB VMEM.
        compiler_params=pltpu.CompilerParams(
            dimension_semantics=("arbitrary",)),
    )(patches0, wm0, br0, s1, wm1, br1, s2, wm2, br2)

    out = out.reshape(n, h2, w2, c2)
    return jnp.transpose(out, (0, 3, 1, 2))                  # NHWC -> NCHW


# ----------------------------------------------------------------------------
# Params + reference
# ----------------------------------------------------------------------------
def init_params(key, chans=3):
    specs = [(32, chans), (64, 32), (128, 64)]
    params = []
    for i, (co, ci) in enumerate(specs):
        kw_key, kb_key = jax.random.split(jax.random.fold_in(key, i))
        scale = float(1.0 / (ci * 9) ** 0.5)
        w = jax.random.uniform(kw_key, (co, ci, 3, 3), jnp.float32, -scale, scale)
        b = jax.random.uniform(kb_key, (co,), jnp.float32, -scale, scale)
        params.append((w, b))
    return params


def _ref_forward(x_nchw, params):
    # Pure-JAX reference (XLA conv + exact GELU) for the correctness check.
    def conv(x, w, b):
        y = jax.lax.conv_general_dilated(
            x, w, window_strides=(2, 2), padding=((1, 1), (1, 1)),
            dimension_numbers=("NCHW", "OIHW", "NCHW"))
        return y + b[None, :, None, None]

    (w0, b0), (w1, b1), (w2, b2) = params
    x = jax.nn.gelu(conv(x_nchw, w0, b0), approximate=False)
    x = jax.nn.gelu(conv(x, w1, b1), approximate=False)
    return conv(x, w2, b2)


if __name__ == "__main__":
    key = jax.random.PRNGKey(0)
    pkey, xkey = jax.random.split(key)
    params = init_params(pkey, chans=3)
    x = jax.random.normal(xkey, (2, 3, 16, 16), jnp.float32)

    fwd = jax.jit(discriminator_forward)
    out = jax.block_until_ready(fwd(x, params))
    assert out.shape == (2, 128, 2, 2), out.shape

    ref = jax.block_until_ready(_ref_forward(x, params))
    max_err = float(jnp.max(jnp.abs(out - ref)))
    assert max_err < 1e-3, f"max abs error {max_err}"

    print("KERNEL_OK")
</pallas_src>

<mosaic_0001>
module attributes {stable_mosaic.version = 11 : i64} {
  func.func @_disc_kernel(%arg0: i32, %arg1: memref<128x27xf32, #tpu.memory_space<vmem>>, %arg2: memref<27x32xf32, #tpu.memory_space<vmem>>, %arg3: memref<1x32xf32, #tpu.memory_space<vmem>>, %arg4: memref<288x128xf32, #tpu.memory_space<vmem>>, %arg5: memref<288x64xf32, #tpu.memory_space<vmem>>, %arg6: memref<1x64xf32, #tpu.memory_space<vmem>>, %arg7: memref<72x32xf32, #tpu.memory_space<vmem>>, %arg8: memref<576x128xf32, #tpu.memory_space<vmem>>, %arg9: memref<1x128xf32, #tpu.memory_space<vmem>>, %arg10: memref<8x128xf32, #tpu.memory_space<vmem>>, %arg11: memref<32x288xf32, #tpu.memory_space<vmem>>, %arg12: memref<8x576xf32, #tpu.memory_space<vmem>>) attributes {dimension_semantics = [#tpu.dimension_semantics<arbitrary>], iteration_bounds = array<i64: 1>, scalar_prefetch = 0 : i64, scratch_operands = 2 : i64, tpu.core_type = #tpu.core_type<tc>, window_params = [{pipeline_mode = #tpu.pipeline_mode<synchronous>, transform_indices = @transform_0, window_bounds = array<i64: 128, 27>}, {pipeline_mode = #tpu.pipeline_mode<synchronous>, transform_indices = @transform_1, window_bounds = array<i64: 27, 32>}, {pipeline_mode = #tpu.pipeline_mode<synchronous>, transform_indices = @transform_2, window_bounds = array<i64: 1, 32>}, {pipeline_mode = #tpu.pipeline_mode<synchronous>, transform_indices = @transform_3, window_bounds = array<i64: 288, 128>}, {pipeline_mode = #tpu.pipeline_mode<synchronous>, transform_indices = @transform_4, window_bounds = array<i64: 288, 64>}, {pipeline_mode = #tpu.pipeline_mode<synchronous>, transform_indices = @transform_5, window_bounds = array<i64: 1, 64>}, {pipeline_mode = #tpu.pipeline_mode<synchronous>, transform_indices = @transform_6, window_bounds = array<i64: 72, 32>}, {pipeline_mode = #tpu.pipeline_mode<synchronous>, transform_indices = @transform_7, window_bounds = array<i64: 576, 128>}, {pipeline_mode = #tpu.pipeline_mode<synchronous>, transform_indices = @transform_8, window_bounds = array<i64: 1, 128>}, {pipeline_mode = #tpu.pipeline_mode<synchronous>, transform_indices = @transform_9, window_bounds = array<i64: 8, 128>}]} {
    %c0 = arith.constant 0 : index
    %c0_0 = arith.constant 0 : index
    %0 = vector.load %arg1[%c0, %c0_0] : memref<128x27xf32, #tpu.memory_space<vmem>>, vector<128x27xf32>
    %c0_1 = arith.constant 0 : index
    %c0_2 = arith.constant 0 : index
    %1 = vector.load %arg2[%c0_1, %c0_2] : memref<27x32xf32, #tpu.memory_space<vmem>>, vector<27x32xf32>
    %cst = arith.constant dense<0.000000e+00> : vector<128x32xf32>
    %2 = tpu.matmul %0, %1, %cst {dimension_numbers = #tpu.dot_dimension_numbers<[1], [0], [0], [1], [0, 0, 1, 1], [], []>} : vector<128x27xf32>, vector<27x32xf32>, vector<128x32xf32> -> vector<128x32xf32>
    %c0_3 = arith.constant 0 : index
    %c0_4 = arith.constant 0 : index
    %3 = vector.load %arg3[%c0_3, %c0_4] : memref<1x32xf32, #tpu.memory_space<vmem>>, vector<1x32xf32>
    %4 = vector.broadcast %3 : vector<1x32xf32> to vector<128x32xf32>
    %5 = arith.addf %2, %4 : vector<128x32xf32>
    %cst_5 = arith.constant 5.000000e-01 : f32
    %6 = vector.broadcast %cst_5 : f32 to vector<128x32xf32>
    %7 = arith.mulf %6, %5 : vector<128x32xf32>
    %cst_6 = arith.constant 0.707106769 : f32
    %8 = vector.broadcast %cst_6 : f32 to vector<128x32xf32>
    %9 = arith.mulf %5, %8 : vector<128x32xf32>
    %cst_7 = arith.constant 0.000000e+00 : f32
    %10 = vector.broadcast %cst_7 : f32 to vector<128x32xf32>
    %11 = arith.cmpf oge, %9, %10 : vector<128x32xf32>
    %cst_8 = arith.constant 1.000000e+00 : f32
    %cst_9 = arith.constant -1.000000e+00 : f32
    %12 = vector.broadcast %cst_8 : f32 to vector<128x32xf32>
    %13 = vector.broadcast %cst_9 : f32 to vector<128x32xf32>
    %14 = arith.select %11, %12, %13 : vector<128x32xi1>, vector<128x32xf32>
    %15 = math.absf %9 : vector<128x32xf32>
    %cst_10 = arith.constant 0.327591091 : f32
    %16 = vector.broadcast %cst_10 : f32 to vector<128x32xf32>
    %17 = arith.mulf %16, %15 : vector<128x32xf32>
    %cst_11 = arith.constant 1.000000e+00 : f32
    %18 = vector.broadcast %cst_11 : f32 to vector<128x32xf32>
    %19 = arith.addf %18, %17 : vector<128x32xf32>
    %cst_12 = arith.constant 1.000000e+00 : f32
    %20 = vector.broadcast %cst_12 : f32 to vector<128x32xf32>
    %21 = arith.divf %20, %19 : vector<128x32xf32>
    %cst_13 = arith.constant 1.06140542 : f32
    %22 = vector.broadcast %cst_13 : f32 to vector<128x32xf32>
    %23 = arith.mulf %22, %21 : vector<128x32xf32>
    %cst_14 = arith.constant -1.45315206 : f32
    %24 = vector.broadcast %cst_14 : f32 to vector<128x32xf32>
    %25 = arith.addf %23, %24 : vector<128x32xf32>
    %26 = arith.mulf %25, %21 : vector<128x32xf32>
    %cst_15 = arith.constant 1.42141378 : f32
    %27 = vector.broadcast %cst_15 : f32 to vector<128x32xf32>
    %28 = arith.addf %26, %27 : vector<128x32xf32>
    %29 = arith.mulf %28, %21 : vector<128x32xf32>
    %cst_16 = arith.constant -0.284496725 : f32
    %30 = vector.broadcast %cst_16 : f32 to vector<128x32xf32>
    %31 = arith.addf %29, %30 : vector<128x32xf32>
    %32 = arith.mulf %31, %21 : vector<128x32xf32>
    %cst_17 = arith.constant 0.254829586 : f32
    %33 = vector.broadcast %cst_17 : f32 to vector<128x32xf32>
    %34 = arith.addf %32, %33 : vector<128x32xf32>
    %35 = arith.mulf %34, %21 : vector<128x32xf32>
    %cst_18 = arith.constant 0.000000e+00 : f32
    %36 = vector.broadcast %cst_18 : f32 to vector<128x32xf32>
    %37 = arith.subf %36, %15 : vector<128x32xf32>
    %38 = arith.mulf %37, %15 : vector<128x32xf32>
    %39 = math.exp %38 : vector<128x32xf32>
    %40 = arith.mulf %35, %39 : vector<128x32xf32>
    %cst_19 = arith.constant 1.000000e+00 : f32
    %41 = vector.broadcast %cst_19 : f32 to vector<128x32xf32>
    %42 = arith.subf %41, %40 : vector<128x32xf32>
    %43 = arith.mulf %14, %42 : vector<128x32xf32>
    %cst_20 = arith.constant 1.000000e+00 : f32
    %44 = vector.broadcast %cst_20 : f32 to vector<128x32xf32>
    %45 = arith.addf %44, %43 : vector<128x32xf32>
    %46 = arith.mulf %7, %45 : vector<128x32xf32>
    %c0_21 = arith.constant 0 : index
    %c0_22 = arith.constant 0 : index
    %47 = vector.load %arg4[%c0_21, %c0_22] : memref<288x128xf32, #tpu.memory_space<vmem>>, vector<288x128xf32>
    %cst_23 = arith.constant dense<0.000000e+00> : vector<288x32xf32>
    %48 = tpu.matmul %47, %46, %cst_23 {dimension_numbers = #tpu.dot_dimension_numbers<[1], [0], [0], [1], [0, 0, 1, 1], [], []>} : vector<288x128xf32>, vector<128x32xf32>, vector<288x32xf32> -> vector<288x32xf32>
    %49 = vector.extract_strided_slice %48 {offsets = [0, 0], sizes = [32, 32], strides = [1, 1]} : vector<288x32xf32> to vector<32x32xf32>
    %c0_24 = arith.constant 0 : index
    %c0_25 = arith.constant 0 : index
    %50 = vector.load %arg11[%c0_24, %c0_25] : memref<32x288xf32, #tpu.memory_space<vmem>>, vector<32x32xf32>
    tpu.vector_store %arg11[%c0_24, %c0_25], %49 {strides = array<i32>} : memref<32x288xf32, #tpu.memory_space<vmem>>, vector<32x32xf32>,
    %51 = vector.extract_strided_slice %48 {offsets = [32, 0], sizes = [32, 32], strides = [1, 1]} : vector<288x32xf32> to vector<32x32xf32>
    %c0_26 = arith.constant 0 : index
    %c32 = arith.constant 32 : index
    %52 = vector.load %arg11[%c0_26, %c32] : memref<32x288xf32, #tpu.memory_space<vmem>>, vector<32x32xf32>
    tpu.vector_store %arg11[%c0_26, %c32], %51 {strides = array<i32>} : memref<32x288xf32, #tpu.memory_space<vmem>>, vector<32x32xf32>,
    %53 = vector.extract_strided_slice %48 {offsets = [64, 0], sizes = [32, 32], strides = [1, 1]} : vector<288x32xf32> to vector<32x32xf32>
    %c0_27 = arith.constant 0 : index
    %c64 = arith.constant 64 : index
    %54 = vector.load %arg11[%c0_27, %c64] : memref<32x288xf32, #tpu.memory_space<vmem>>, vector<32x32xf32>
    tpu.vector_store %arg11[%c0_27, %c64], %53 {strides = array<i32>} : memref<32x288xf32, #tpu.memory_space<vmem>>, vector<32x32xf32>,
    %55 = vector.extract_strided_slice %48 {offsets = [96, 0], sizes = [32, 32], strides = [1, 1]} : vector<288x32xf32> to vector<32x32xf32>
    %c0_28 = arith.constant 0 : index
    %c96 = arith.constant 96 : index
    %56 = vector.load %arg11[%c0_28, %c96] : memref<32x288xf32, #tpu.memory_space<vmem>>, vector<32x32xf32>
    tpu.vector_store %arg11[%c0_28, %c96], %55 {strides = array<i32>} : memref<32x288xf32, #tpu.memory_space<vmem>>, vector<32x32xf32>,
    %57 = vector.extract_strided_slice %48 {offsets = [128, 0], sizes = [32, 32], strides = [1, 1]} : vector<288x32xf32> to vector<32x32xf32>
    %c0_29 = arith.constant 0 : index
    %c128 = arith.constant 128 : index
    %58 = vector.load %arg11[%c0_29, %c128] : memref<32x288xf32, #tpu.memory_space<vmem>>, vector<32x32xf32>
    tpu.vector_store %arg11[%c0_29, %c128], %57 {strides = array<i32>} : memref<32x288xf32, #tpu.memory_space<vmem>>, vector<32x32xf32>,
    %59 = vector.extract_strided_slice %48 {offsets = [160, 0], sizes = [32, 32], strides = [1, 1]} : vector<288x32xf32> to vector<32x32xf32>
    %c0_30 = arith.constant 0 : index
    %c160 = arith.constant 160 : index
    %60 = vector.load %arg11[%c0_30, %c160] : memref<32x288xf32, #tpu.memory_space<vmem>>, vector<32x32xf32>
    tpu.vector_store %arg11[%c0_30, %c160], %59 {strides = array<i32>} : memref<32x288xf32, #tpu.memory_space<vmem>>, vector<32x32xf32>,
    %61 = vector.extract_strided_slice %48 {offsets = [192, 0], sizes = [32, 32], strides = [1, 1]} : vector<288x32xf32> to vector<32x32xf32>
    %c0_31 = arith.constant 0 : index
    %c192 = arith.constant 192 : index
    %62 = vector.load %arg11[%c0_31, %c192] : memref<32x288xf32, #tpu.memory_space<vmem>>, vector<32x32xf32>
    tpu.vector_store %arg11[%c0_31, %c192], %61 {strides = array<i32>} : memref<32x288xf32, #tpu.memory_space<vmem>>, vector<32x32xf32>,
    %63 = vector.extract_strided_slice %48 {offsets = [224, 0], sizes = [32, 32], strides = [1, 1]} : vector<288x32xf32> to vector<32x32xf32>
    %c0_32 = arith.constant 0 : index
    %c224 = arith.constant 224 : index
    %64 = vector.load %arg11[%c0_32, %c224] : memref<32x288xf32, #tpu.memory_space<vmem>>, vector<32x32xf32>
    tpu.vector_store %arg11[%c0_32, %c224], %63 {strides = array<i32>} : memref<32x288xf32, #tpu.memory_space<vmem>>, vector<32x32xf32>,
    %65 = vector.extract_strided_slice %48 {offsets = [256, 0], sizes = [32, 32], strides = [1, 1]} : vector<288x32xf32> to vector<32x32xf32>
    %c0_33 = arith.constant 0 : index
    %c256 = arith.constant 256 : index
    %66 = vector.load %arg11[%c0_33, %c256] : memref<32x288xf32, #tpu.memory_space<vmem>>, vector<32x32xf32>
    tpu.vector_store %arg11[%c0_33, %c256], %65 {strides = array<i32>} : memref<32x288xf32, #tpu.memory_space<vmem>>, vector<32x32xf32>,
    %c0_34 = arith.constant 0 : index
    %c0_35 = arith.constant 0 : index
    %67 = vector.load %arg11[%c0_34, %c0_35] : memref<32x288xf32, #tpu.memory_space<vmem>>, vector<32x288xf32>
    %c0_36 = arith.constant 0 : index
    %c0_37 = arith.constant 0 : index
    %68 = vector.load %arg5[%c0_36, %c0_37] : memref<288x64xf32, #tpu.memory_space<vmem>>, vector<288x64xf32>
    %cst_38 = arith.constant dense<0.000000e+00> : vector<32x64xf32>
    %69 = tpu.matmul %67, %68, %cst_38 {dimension_numbers = #tpu.dot_dimension_numbers<[1], [0], [0], [1], [0, 0, 1, 1], [], []>} : vector<32x288xf32>, vector<288x64xf32>, vector<32x64xf32> -> vector<32x64xf32>
    %c0_39 = arith.constant 0 : index
    %c0_40 = arith.constant 0 : index
    %70 = vector.load %arg6[%c0_39, %c0_40] : memref<1x64xf32, #tpu.memory_space<vmem>>, vector<1x64xf32>
    %71 = vector.broadcast %70 : vector<1x64xf32> to vector<32x64xf32>
    %72 = arith.addf %69, %71 : vector<32x64xf32>
    %cst_41 = arith.constant 5.000000e-01 : f32
    %73 = vector.broadcast %cst_41 : f32 to vector<32x64xf32>
    %74 = arith.mulf %73, %72 : vector<32x64xf32>
    %cst_42 = arith.constant 0.707106769 : f32
    %75 = vector.broadcast %cst_42 : f32 to vector<32x64xf32>
    %76 = arith.mulf %72, %75 : vector<32x64xf32>
    %cst_43 = arith.constant 0.000000e+00 : f32
    %77 = vector.broadcast %cst_43 : f32 to vector<32x64xf32>
    %78 = arith.cmpf oge, %76, %77 : vector<32x64xf32>
    %cst_44 = arith.constant 1.000000e+00 : f32
    %cst_45 = arith.constant -1.000000e+00 : f32
    %79 = vector.broadcast %cst_44 : f32 to vector<32x64xf32>
    %80 = vector.broadcast %cst_45 : f32 to vector<32x64xf32>
    %81 = arith.select %78, %79, %80 : vector<32x64xi1>, vector<32x64xf32>
    %82 = math.absf %76 : vector<32x64xf32>
    %cst_46 = arith.constant 0.327591091 : f32
    %83 = vector.broadcast %cst_46 : f32 to vector<32x64xf32>
    %84 = arith.mulf %83, %82 : vector<32x64xf32>
    %cst_47 = arith.constant 1.000000e+00 : f32
    %85 = vector.broadcast %cst_47 : f32 to vector<32x64xf32>
    %86 = arith.addf %85, %84 : vector<32x64xf32>
    %cst_48 = arith.constant 1.000000e+00 : f32
    %87 = vector.broadcast %cst_48 : f32 to vector<32x64xf32>
    %88 = arith.divf %87, %86 : vector<32x64xf32>
    %cst_49 = arith.constant 1.06140542 : f32
    %89 = vector.broadcast %cst_49 : f32 to vector<32x64xf32>
    %90 = arith.mulf %89, %88 : vector<32x64xf32>
    %cst_50 = arith.constant -1.45315206 : f32
    %91 = vector.broadcast %cst_50 : f32 to vector<32x64xf32>
    %92 = arith.addf %90, %91 : vector<32x64xf32>
    %93 = arith.mulf %92, %88 : vector<32x64xf32>
    %cst_51 = arith.constant 1.42141378 : f32
    %94 = vector.broadcast %cst_51 : f32 to vector<32x64xf32>
    %95 = arith.addf %93, %94 : vector<32x64xf32>
    %96 = arith.mulf %95, %88 : vector<32x64xf32>
    %cst_52 = arith.constant -0.284496725 : f32
    %97 = vector.broadcast %cst_52 : f32 to vector<32x64xf32>
    %98 = arith.addf %96, %97 : vector<32x64xf32>
    %99 = arith.mulf %98, %88 : vector<32x64xf32>
    %cst_53 = arith.constant 0.254829586 : f32
    %100 = vector.broadcast %cst_53 : f32 to vector<32x64xf32>
    %101 = arith.addf %99, %100 : vector<32x64xf32>
    %102 = arith.mulf %101, %88 : vector<32x64xf32>
    %cst_54 = arith.constant 0.000000e+00 : f32
    %103 = vector.broadcast %cst_54 : f32 to vector<32x64xf32>
    %104 = arith.subf %103, %82 : vector<32x64xf32>
    %105 = arith.mulf %104, %82 : vector<32x64xf32>
    %106 = math.exp %105 : vector<32x64xf32>
    %107 = arith.mulf %102, %106 : vector<32x64xf32>
    %cst_55 = arith.constant 1.000000e+00 : f32
    %108 = vector.broadcast %cst_55 : f32 to vector<32x64xf32>
    %109 = arith.subf %108, %107 : vector<32x64xf32>
    %110 = arith.mulf %81, %109 : vector<32x64xf32>
    %cst_56 = arith.constant 1.000000e+00 : f32
    %111 = vector.broadcast %cst_56 : f32 to vector<32x64xf32>
    %112 = arith.addf %111, %110 : vector<32x64xf32>
    %113 = arith.mulf %74, %112 : vector<32x64xf32>
    %c0_57 = arith.constant 0 : index
    %c0_58 = arith.constant 0 : index
    %114 = vector.load %arg7[%c0_57, %c0_58] : memref<72x32xf32, #tpu.memory_space<vmem>>, vector<72x32xf32>
    %cst_59 = arith.constant dense<0.000000e+00> : vector<72x64xf32>
    %115 = tpu.matmul %114, %113, %cst_59 {dimension_numbers = #tpu.dot_dimension_numbers<[1], [0], [0], [1], [0, 0, 1, 1], [], []>} : vector<72x32xf32>, vector<32x64xf32>, vector<72x64xf32> -> vector<72x64xf32>
    %116 = vector.extract_strided_slice %115 {offsets = [0, 0], sizes = [8, 64], strides = [1, 1]} : vector<72x64xf32> to vector<8x64xf32>
    %c0_60 = arith.constant 0 : index
    %c0_61 = arith.constant 0 : index
    %117 = vector.load %arg12[%c0_60, %c0_61] : memref<8x576xf32, #tpu.memory_space<vmem>>, vector<8x64xf32>
    tpu.vector_store %arg12[%c0_60, %c0_61], %116 {strides = array<i32>} : memref<8x576xf32, #tpu.memory_space<vmem>>, vector<8x64xf32>,
    %118 = vector.extract_strided_slice %115 {offsets = [8, 0], sizes = [8, 64], strides = [1, 1]} : vector<72x64xf32> to vector<8x64xf32>
    %c0_62 = arith.constant 0 : index
    %c64_63 = arith.constant 64 : index
    %119 = vector.load %arg12[%c0_62, %c64_63] : memref<8x576xf32, #tpu.memory_space<vmem>>, vector<8x64xf32>
    tpu.vector_store %arg12[%c0_62, %c64_63], %118 {strides = array<i32>} : memref<8x576xf32, #tpu.memory_space<vmem>>, vector<8x64xf32>,
    %120 = vector.extract_strided_slice %115 {offsets = [16, 0], sizes = [8, 64], strides = [1, 1]} : vector<72x64xf32> to vector<8x64xf32>
    %c0_64 = arith.constant 0 : index
    %c128_65 = arith.constant 128 : index
    %121 = vector.load %arg12[%c0_64, %c128_65] : memref<8x576xf32, #tpu.memory_space<vmem>>, vector<8x64xf32>
    tpu.vector_store %arg12[%c0_64, %c128_65], %120 {strides = array<i32>} : memref<8x576xf32, #tpu.memory_space<vmem>>, vector<8x64xf32>,
    %122 = vector.extract_strided_slice %115 {offsets = [24, 0], sizes = [8, 64], strides = [1, 1]} : vector<72x64xf32> to vector<8x64xf32>
    %c0_66 = arith.constant 0 : index
    %c192_67 = arith.constant 192 : index
    %123 = vector.load %arg12[%c0_66, %c192_67] : memref<8x576xf32, #tpu.memory_space<vmem>>, vector<8x64xf32>
    tpu.vector_store %arg12[%c0_66, %c192_67], %122 {strides = array<i32>} : memref<8x576xf32, #tpu.memory_space<vmem>>, vector<8x64xf32>,
    %124 = vector.extract_strided_slice %115 {offsets = [32, 0], sizes = [8, 64], strides = [1, 1]} : vector<72x64xf32> to vector<8x64xf32>
    %c0_68 = arith.constant 0 : index
    %c256_69 = arith.constant 256 : index
    %125 = vector.load %arg12[%c0_68, %c256_69] : memref<8x576xf32, #tpu.memory_space<vmem>>, vector<8x64xf32>
    tpu.vector_store %arg12[%c0_68, %c256_69], %124 {strides = array<i32>} : memref<8x576xf32, #tpu.memory_space<vmem>>, vector<8x64xf32>,
    %126 = vector.extract_strided_slice %115 {offsets = [40, 0], sizes = [8, 64], strides = [1, 1]} : vector<72x64xf32> to vector<8x64xf32>
    %c0_70 = arith.constant 0 : index
    %c320 = arith.constant 320 : index
    %127 = vector.load %arg12[%c0_70, %c320] : memref<8x576xf32, #tpu.memory_space<vmem>>, vector<8x64xf32>
    tpu.vector_store %arg12[%c0_70, %c320], %126 {strides = array<i32>} : memref<8x576xf32, #tpu.memory_space<vmem>>, vector<8x64xf32>,
    %128 = vector.extract_strided_slice %115 {offsets = [48, 0], sizes = [8, 64], strides = [1, 1]} : vector<72x64xf32> to vector<8x64xf32>
    %c0_71 = arith.constant 0 : index
    %c384 = arith.constant 384 : index
    %129 = vector.load %arg12[%c0_71, %c384] : memref<8x576xf32, #tpu.memory_space<vmem>>, vector<8x64xf32>
    tpu.vector_store %arg12[%c0_71, %c384], %128 {strides = array<i32>} : memref<8x576xf32, #tpu.memory_space<vmem>>, vector<8x64xf32>,
    %130 = vector.extract_strided_slice %115 {offsets = [56, 0], sizes = [8, 64], strides = [1, 1]} : vector<72x64xf32> to vector<8x64xf32>
    %c0_72 = arith.constant 0 : index
    %c448 = arith.constant 448 : index
    %131 = vector.load %arg12[%c0_72, %c448] : memref<8x576xf32, #tpu.memory_space<vmem>>, vector<8x64xf32>
    tpu.vector_store %arg12[%c0_72, %c448], %130 {strides = array<i32>} : memref<8x576xf32, #tpu.memory_space<vmem>>, vector<8x64xf32>,
    %132 = vector.extract_strided_slice %115 {offsets = [64, 0], sizes = [8, 64], strides = [1, 1]} : vector<72x64xf32> to vector<8x64xf32>
    %c0_73 = arith.constant 0 : index
    %c512 = arith.constant 512 : index
    %133 = vector.load %arg12[%c0_73, %c512] : memref<8x576xf32, #tpu.memory_space<vmem>>, vector<8x64xf32>
    tpu.vector_store %arg12[%c0_73, %c512], %132 {strides = array<i32>} : memref<8x576xf32, #tpu.memory_space<vmem>>, vector<8x64xf32>,
    %c0_74 = arith.constant 0 : index
    %c0_75 = arith.constant 0 : index
    %134 = vector.load %arg12[%c0_74, %c0_75] : memref<8x576xf32, #tpu.memory_space<vmem>>, vector<8x576xf32>
    %c0_76 = arith.constant 0 : index
    %c0_77 = arith.constant 0 : index
    %135 = vector.load %arg8[%c0_76, %c0_77] : memref<576x128xf32, #tpu.memory_space<vmem>>, vector<576x128xf32>
    %cst_78 = arith.constant dense<0.000000e+00> : vector<8x128xf32>
    %136 = tpu.matmul %134, %135, %cst_78 {dimension_numbers = #tpu.dot_dimension_numbers<[1], [0], [0], [1], [0, 0, 1, 1], [], []>} : vector<8x576xf32>, vector<576x128xf32>, vector<8x128xf32> -> vector<8x128xf32>
    %c0_79 = arith.constant 0 : index
    %c0_80 = arith.constant 0 : index
    %137 = vector.load %arg9[%c0_79, %c0_80] : memref<1x128xf32, #tpu.memory_space<vmem>>, vector<1x128xf32>
    %138 = vector.broadcast %137 : vector<1x128xf32> to vector<8x128xf32>
    %139 = arith.addf %136, %138 : vector<8x128xf32>
    %c0_81 = arith.constant 0 : index
    %c0_82 = arith.constant 0 : index
    %140 = vector.load %arg10[%c0_81, %c0_82] : memref<8x128xf32, #tpu.memory_space<vmem>>, vector<8x128xf32>
    tpu.vector_store %arg10[%c0_81, %c0_82], %139 {strides = array<i32>} : memref<8x128xf32, #tpu.memory_space<vmem>>, vector<8x128xf32>,
    return
  }
  func.func @transform_0(%arg0: i32) -> (i32, i32) {
    %c0_i32 = arith.constant 0 : i32
    %c0_i32_0 = arith.constant 0 : i32
    %c0_i32_1 = arith.constant 0 : i32
    return %c0_i32, %c0_i32_0 : i32, i32
  }
  func.func @transform_1(%arg0: i32) -> (i32, i32) {
    %c0_i32 = arith.constant 0 : i32
    %c0_i32_0 = arith.constant 0 : i32
    %c0_i32_1 = arith.constant 0 : i32
    return %c0_i32, %c0_i32_0 : i32, i32
  }
  func.func @transform_2(%arg0: i32) -> (i32, i32) {
    %c0_i32 = arith.constant 0 : i32
    %c0_i32_0 = arith.constant 0 : i32
    %c0_i32_1 = arith.constant 0 : i32
    return %c0_i32, %c0_i32_0 : i32, i32
  }
  func.func @transform_3(%arg0: i32) -> (i32, i32) {
    %c0_i32 = arith.constant 0 : i32
    %c0_i32_0 = arith.constant 0 : i32
    %c0_i32_1 = arith.constant 0 : i32
    return %c0_i32, %c0_i32_0 : i32, i32
  }
  func.func @transform_4(%arg0: i32) -> (i32, i32) {
    %c0_i32 = arith.constant 0 : i32
    %c0_i32_0 = arith.constant 0 : i32
    %c0_i32_1 = arith.constant 0 : i32
    return %c0_i32, %c0_i32_0 : i32, i32
  }
  func.func @transform_5(%arg0: i32) -> (i32, i32) {
    %c0_i32 = arith.constant 0 : i32
    %c0_i32_0 = arith.constant 0 : i32
    %c0_i32_1 = arith.constant 0 : i32
    return %c0_i32, %c0_i32_0 : i32, i32
  }
  func.func @transform_6(%arg0: i32) -> (i32, i32) {
    %c0_i32 = arith.constant 0 : i32
    %c0_i32_0 = arith.constant 0 : i32
    %c0_i32_1 = arith.constant 0 : i32
    return %c0_i32, %c0_i32_0 : i32, i32
  }
  func.func @transform_7(%arg0: i32) -> (i32, i32) {
    %c0_i32 = arith.constant 0 : i32
    %c0_i32_0 = arith.constant 0 : i32
    %c0_i32_1 = arith.constant 0 : i32
    return %c0_i32, %c0_i32_0 : i32, i32
  }
  func.func @transform_8(%arg0: i32) -> (i32, i32) {
    %c0_i32 = arith.constant 0 : i32
    %c0_i32_0 = arith.constant 0 : i32
    %c0_i32_1 = arith.constant 0 : i32
    return %c0_i32, %c0_i32_0 : i32, i32
  }
  func.func @transform_9(%arg0: i32) -> (i32, i32) {
    %c0_i32 = arith.constant 0 : i32
    %c0_i32_0 = arith.constant 0 : i32
    %c0_i32_1 = arith.constant 0 : i32
    return %c0_i32, %c0_i32_0 : i32, i32
  }
}

</mosaic_0001>

<llo_original>
// kernel: discriminator_forward.1
$region0: #{discriminator_forward.1}
  #allocation0 [shape = 'u32[]', space=smem, size = 0x4, offset = 0x4, fixed_abs, tag = 'smem constant byte address 0x4 - core index']
  #allocation1 [shape = 'u32[144,128]{1,0:T(1,128)}', space=vmem, size = 0x12000, scoped, tag = 'internal scratch']
  #allocation2 [shape = 'f32[32,288]{1,0:T(8,128)}', space=vmem, size = 0xc000, scoped, tag = 'scratch operand']
  #allocation3 [shape = 'f32[8,576]{1,0:T(8,128)}', space=vmem, size = 0x5000, scoped, tag = 'scratch operand']
  %s0 = inlined_call_operand.vmem [shape: f32[128,27], index: 0, kind: input, shape index: {}]
  %s1 = inlined_call_operand.vmem [shape: f32[27,32], index: 1, kind: input, shape index: {}]
  %s2 = inlined_call_operand.vmem [shape: f32[1,32], index: 2, kind: input, shape index: {}]
  %s3 = inlined_call_operand.vmem [shape: f32[288,128], index: 3, kind: input, shape index: {}]
  %s4 = inlined_call_operand.vmem [shape: f32[288,64], index: 4, kind: input, shape index: {}]
  %s5 = inlined_call_operand.vmem [shape: f32[1,64], index: 5, kind: input, shape index: {}]
  %s6 = inlined_call_operand.vmem [shape: f32[72,32], index: 6, kind: input, shape index: {}]
  %s7 = inlined_call_operand.vmem [shape: f32[576,128], index: 7, kind: input, shape index: {}]
  %s8 = inlined_call_operand.vmem [shape: f32[1,128], index: 8, kind: input, shape index: {}]
  %s9 = inlined_call_operand.hbm [shape: f32[8,128], index: 9, kind: output, shape index: {}]
  %s10 = sld [smem:[#allocation0]]
  $region46: #{discriminator_forward.1} parent=0
    _
  %s12 = ssub.s32 1, %s10
  %s13 = scalar_select 0, %s12, %s10
  $region1: #{discriminator_forward.1} parent=0
    #allocation4 [shape = 'u8[4096]{0}', space=vmem, size = 0x1000, scoped, tag = 'output window, operand 0, single buffered']
    #allocation5 [shape = 's32[1]{0}', space=sflag, size = 0x4, scoped, tag = 'scoped memory for discriminator_forward.1']
    %14 = vsyncpa [#allocation5], 0
    // Predicated region
    $region2: #{discriminator_forward.1} parent=1 // pred_check
      _
    $region3: #{discriminator_forward.1} parent=1 // pred_check_branch
      %16 = sbr.rel (0) target = $region5
    $region4: #{discriminator_forward.1} parent=1 // pred_region
      _
    $region5: #{discriminator_forward.1} parent=1 // pred_fallthru
      _
    // Predicated region
    $region6: #{discriminator_forward.1} parent=1 // pred_check
      _
    $region7: #{discriminator_forward.1} parent=1 // pred_check_branch
      %18 = sbr.rel (0) target = $region9
    $region8: #{discriminator_forward.1} parent=1 // pred_region
      _
    $region9: #{discriminator_forward.1} parent=1 // pred_fallthru
      _
    // Predicated region
    $region10: #{discriminator_forward.1} parent=1 // pred_check
      _
    $region11: #{discriminator_forward.1} parent=1 // pred_check_branch
      %20 = sbr.rel (0) target = $region13
    $region12: #{discriminator_forward.1} parent=1 // pred_region
      _
    $region13: #{discriminator_forward.1} parent=1 // pred_fallthru
      _
    // Predicated region
    $region14: #{discriminator_forward.1} parent=1 // pred_check
      _
    $region15: #{discriminator_forward.1} parent=1 // pred_check_branch
      %22 = sbr.rel (0) target = $region17
    $region16: #{discriminator_forward.1} parent=1 // pred_region
      _
    $region17: #{discriminator_forward.1} parent=1 // pred_fallthru
      _
    // Predicated region
    $region18: #{discriminator_forward.1} parent=1 // pred_check
      _
    $region19: #{discriminator_forward.1} parent=1 // pred_check_branch
      %24 = sbr.rel (0) target = $region21
    $region20: #{discriminator_forward.1} parent=1 // pred_region
      _
    $region21: #{discriminator_forward.1} parent=1 // pred_fallthru
      _
    // Predicated region
    $region22: #{discriminator_forward.1} parent=1 // pred_check
      _
    $region23: #{discriminator_forward.1} parent=1 // pred_check_branch
      %26 = sbr.rel (0) target = $region25
    $region24: #{discriminator_forward.1} parent=1 // pred_region
      _
    $region25: #{discriminator_forward.1} parent=1 // pred_fallthru
      _
    // Predicated region
    $region26: #{discriminator_forward.1} parent=1 // pred_check
      _
    $region27: #{discriminator_forward.1} parent=1 // pred_check_branch
      %28 = sbr.rel (0) target = $region29
    $region28: #{discriminator_forward.1} parent=1 // pred_region
      _
    $region29: #{discriminator_forward.1} parent=1 // pred_fallthru
      _
    // Predicated region
    $region30: #{discriminator_forward.1} parent=1 // pred_check
      _
    $region31: #{discriminator_forward.1} parent=1 // pred_check_branch
      %30 = sbr.rel (0) target = $region33
    $region32: #{discriminator_forward.1} parent=1 // pred_region
      _
    $region33: #{discriminator_forward.1} parent=1 // pred_fallthru
      _
    // Predicated region
    $region34: #{discriminator_forward.1} parent=1 // pred_check
      _
    $region35: #{discriminator_forward.1} parent=1 // pred_check_branch
      %32 = sbr.rel (0) target = $region37
    $region36: #{discriminator_forward.1} parent=1 // pred_region
      _
    $region37: #{discriminator_forward.1} parent=1 // pred_fallthru
      _
    %v33 = vld [vmem:[%s0] sm:$0xff]
    %v34 = vld [vmem:[%s0 + $0x8] sm:$0xff]
    %v35 = vld [vmem:[%s0 + $0x10] sm:$0xff]
    %v36 = vld [vmem:[%s0 + $0x18] sm:$0xff]
    %v37 = vld [vmem:[%s0 + $0x20] sm:$0xff]
    %v38 = vld [vmem:[%s0 + $0x28] sm:$0xff]
    %v39 = vld [vmem:[%s0 + $0x30] sm:$0xff]
    %v40 = vld [vmem:[%s0 + $0x38] sm:$0xff]
    %v41 = vld [vmem:[%s0 + $0x40] sm:$0xff]
    %v42 = vld [vmem:[%s0 + $0x48] sm:$0xff]
    %v43 = vld [vmem:[%s0 + $0x50] sm:$0xff]
    %v44 = vld [vmem:[%s0 + $0x58] sm:$0xff]
    %v45 = vld [vmem:[%s0 + $0x60] sm:$0xff]
    %v46 = vld [vmem:[%s0 + $0x68] sm:$0xff]
    %v47 = vld [vmem:[%s0 + $0x70] sm:$0xff]
    %v48 = vld [vmem:[%s0 + $0x78] sm:$0xff]
    %v49 = vld [vmem:[%s1] sm:$0xff]
    %v50 = vld [vmem:[%s1 + $0x8] sm:$0xff]
    %v51 = vld [vmem:[%s1 + $0x10] sm:$0xff]
    %v52 = vld [vmem:[%s1 + $0x18] sm:$0x7]
    %v53 = vld [vmem:[%s2] sm:$0x1]
    %v55 = vlaneseq
    %v56 = vshrl.u32 %v55, 7
    %v57 = vsub.s32 0, %v56
    %v58 = vrot.slane %v53, %v57
    %vm60 = vcmask 220160
    %v62 = vsel %vm60, %v33, 0
    %v65 = vsel %vm60, %v34, 0
    %v68 = vsel %vm60, %v35, 0
    %v71 = vsel %vm60, %v36, 0
    %v74 = vsel %vm60, %v37, 0
    %v77 = vsel %vm60, %v38, 0
    %v80 = vsel %vm60, %v39, 0
    %v83 = vsel %vm60, %v40, 0
    %v86 = vsel %vm60, %v41, 0
    %v89 = vsel %vm60, %v42, 0
    %v92 = vsel %vm60, %v43, 0
    %v95 = vsel %vm60, %v44, 0
    %v98 = vsel %vm60, %v45, 0
    %v101 = vsel %vm60, %v46, 0
    %v104 = vsel %vm60, %v47, 0
    %v107 = vsel %vm60, %v48, 0
    %vm109 = vcmask 1042432
    %v111 = vsel %vm109, %v52, 0
    %113 = vmatprep.subr.mxu0 0.0
    %114 = vmatpush1.msra.mxu0 %v49
    %115 = vmatprep.subr.mxu0 0.0
    %116 = vmatpush1.msra.mxu0 %v50
    %117 = vmatprep.subr.mxu0 0.0
    %118 = vmatpush1.msra.mxu0 %v51
    %119 = vmatprep.subr.mxu0 0.0
    %120 = vmatpush1.msra.mxu0 %v111
    %121 = vmatprep.subr.mxu0 0.0
    %122 = vmatpush1.msra.mxu0 0.0
    %123 = vmatprep.subr.mxu0 0.0
    %124 = vmatpush1.msra.mxu0 0.0
    %125 = vmatprep.subr.mxu0 0.0
    %126 = vmatpush1.msra.mxu0 0.0
    %127 = vmatprep.subr.mxu0 0.0
    %128 = vmatpush1.msra.mxu0 0.0
    %129 = vmatprep.subr.mxu0 0.0
    %130 = vmatpush1.msra.mxu0 0.0
    %131 = vmatprep.subr.mxu0 0.0
    %132 = vmatpush1.msra.mxu0 0.0
    %133 = vmatprep.subr.mxu0 0.0
    %134 = vmatpush1.msra.mxu0 0.0
    %135 = vmatprep.subr.mxu0 0.0
    %136 = vmatpush1.msra.mxu0 0.0
    %137 = vmatprep.subr.mxu0 0.0
    %138 = vmatpush1.msra.mxu0 0.0
    %139 = vmatprep.subr.mxu0 0.0
    %140 = vmatpush1.msra.mxu0 0.0
    %141 = vmatprep.subr.mxu0 0.0
    %142 = vmatpush1.msra.mxu0 0.0
    %143 = vmatprep.subr.mxu0 0.0
    %144 = vmatpush1.msra.mxu0 0.0
    %145 = vmatprep.subr.mxu0 0.0
    %146 = vmatpush1.msra.mxu0 0.0
    %147 = vmatprep.subr.mxu0 0.0
    %148 = vmatpush1.msra.mxu0 0.0
    %149 = vmatprep.subr.mxu0 0.0
    %150 = vmatpush1.msra.mxu0 0.0
    %151 = vmatprep.subr.mxu0 0.0
    %152 = vmatpush1.msra.mxu0 0.0
    %153 = vmatprep.subr.mxu0 0.0
    %154 = vmatpush1.msra.mxu0 0.0
    %155 = vmatprep.subr.mxu0 0.0
    %156 = vmatpush1.msra.mxu0 0.0
    %157 = vmatprep.subr.mxu0 0.0
    %158 = vmatpush1.msra.mxu0 0.0
    %159 = vmatprep.subr.mxu0 0.0
    %160 = vmatpush1.msra.mxu0 0.0
    %161 = vmatprep.subr.mxu0 0.0
    %162 = vmatpush1.msra.mxu0 0.0
    %163 = vmatprep.subr.mxu0 0.0
    %164 = vmatpush1.msra.mxu0 0.0
    %165 = vmatprep.subr.mxu0 0.0
    %166 = vmatpush1.msra.mxu0 0.0
    %167 = vmatprep.subr.mxu0 0.0
    %168 = vmatpush1.msra.mxu0 0.0
    %169 = vmatprep.subr.mxu0 0.0
    %170 = vmatpush1.msra.mxu0 0.0
    %171 = vmatprep.subr.mxu0 0.0
    %172 = vmatpush1.msra.mxu0 0.0
    %173 = vmatprep.subr.mxu0 0.0
    %174 = vmatpush1.msra.mxu0 0.0
    %175 = vmatprep.subr.mxu0 0.0
    %176 = vmatpush1.msra.mxu0 0.0
    %177 = vmatprep.mubr.f32.mxu0 0.0
    %178 = vmatmul.mubr.f32.gmra.mrb[0].mxu0 %v62
    %v179 = vpop.f32.mrb[0].mxu0
    %v180 = vadd.f32 %v58, %v179
    %v181 = vpop.f32.mrb[0].mxu0
    %182 = vmatprep.mubr.f32.mxu0 0.0
    %183 = vmatmul.mubr.f32.gmra.mrb[0].mxu0 %v65
    %v184 = vpop.f32.mrb[0].mxu0
    %v185 = vadd.f32 %v58, %v184
    %v186 = vpop.f32.mrb[0].mxu0
    %187 = vmatprep.mubr.f32.mxu0 0.0
    %188 = vmatmul.mubr.f32.gmra.mrb[0].mxu0 %v68
    %v189 = vpop.f32.mrb[0].mxu0
    %v190 = vadd.f32 %v58, %v189
    %v191 = vpop.f32.mrb[0].mxu0
    %192 = vmatprep.mubr.f32.mxu0 0.0
    %193 = vmatmul.mubr.f32.gmra.mrb[0].mxu0 %v71
    %v194 = vpop.f32.mrb[0].mxu0
    %v195 = vadd.f32 %v58, %v194
    %v196 = vpop.f32.mrb[0].mxu0
    %197 = vmatprep.mubr.f32.mxu0 0.0
    %198 = vmatmul.mubr.f32.gmra.mrb[0].mxu0 %v74
    %v199 = vpop.f32.mrb[0].mxu0
    %v200 = vadd.f32 %v58, %v199
    %v201 = vpop.f32.mrb[0].mxu0
    %202 = vmatprep.mubr.f32.mxu0 0.0
    %203 = vmatmul.mubr.f32.gmra.mrb[0].mxu0 %v77
    %v204 = vpop.f32.mrb[0].mxu0
    %v205 = vadd.f32 %v58, %v204
    %v206 = vpop.f32.mrb[0].mxu0
    %207 = vmatprep.mubr.f32.mxu0 0.0
    %208 = vmatmul.mubr.f32.gmra.mrb[0].mxu0 %v80
    %v209 = vpop.f32.mrb[0].mxu0
    %v210 = vadd.f32 %v58, %v209
    %v211 = vpop.f32.mrb[0].mxu0
    %212 = vmatprep.mubr.f32.mxu0 0.0
    %213 = vmatmul.mubr.f32.gmra.mrb[0].mxu0 %v83
    %v214 = vpop.f32.mrb[0].mxu0
    %v215 = vadd.f32 %v58, %v214
    %v216 = vpop.f32.mrb[0].mxu0
    %217 = vmatprep.mubr.f32.mxu0 0.0
    %218 = vmatmul.mubr.f32.gmra.mrb[0].mxu0 %v86
    %v219 = vpop.f32.mrb[0].mxu0
    %v220 = vadd.f32 %v58, %v219
    %v221 = vpop.f32.mrb[0].mxu0
    %222 = vmatprep.mubr.f32.mxu0 0.0
    %223 = vmatmul.mubr.f32.gmra.mrb[0].mxu0 %v89
    %v224 = vpop.f32.mrb[0].mxu0
    %v225 = vadd.f32 %v58, %v224
    %v226 = vpop.f32.mrb[0].mxu0
    %227 = vmatprep.mubr.f32.mxu0 0.0
    %228 = vmatmul.mubr.f32.gmra.mrb[0].mxu0 %v92
    %v229 = vpop.f32.mrb[0].mxu0
    %v230 = vadd.f32 %v58, %v229
    %v231 = vpop.f32.mrb[0].mxu0
    %232 = vmatprep.mubr.f32.mxu0 0.0
    %233 = vmatmul.mubr.f32.gmra.mrb[0].mxu0 %v95
    %v234 = vpop.f32.mrb[0].mxu0
    %v235 = vadd.f32 %v58, %v234
    %v236 = vpop.f32.mrb[0].mxu0
    %237 = vmatprep.mubr.f32.mxu0 0.0
    %238 = vmatmul.mubr.f32.gmra.mrb[0].mxu0 %v98
    %v239 = vpop.f32.mrb[0].mxu0
    %v240 = vadd.f32 %v58, %v239
    %v241 = vpop.f32.mrb[0].mxu0
    %242 = vmatprep.mubr.f32.mxu0 0.0
    %243 = vmatmul.mubr.f32.gmra.mrb[0].mxu0 %v101
    %v244 = vpop.f32.mrb[0].mxu0
    %v245 = vadd.f32 %v58, %v244
    %v246 = vpop.f32.mrb[0].mxu0
    %247 = vmatprep.mubr.f32.mxu0 0.0
    %248 = vmatmul.mubr.f32.gmra.mrb[0].mxu0 %v104
    %v249 = vpop.f32.mrb[0].mxu0
    %v250 = vadd.f32 %v58, %v249
    %v251 = vpop.f32.mrb[0].mxu0
    %252 = vmatprep.mubr.f32.mxu0 0.0
    %253 = vmatmul.mubr.f32.gmra.mrb[0].mxu0 %v107
    %v254 = vpop.f32.mrb[0].mxu0
    %v255 = vadd.f32 %v58, %v254
    %v256 = vpop.f32.mrb[0].mxu0
    %257 = vdwg.mxu0
    %v258 = vmul.f32 %v180, 0.5
    %v259 = vmul.f32 %v185, 0.5
    %v260 = vmul.f32 %v190, 0.5
    %v261 = vmul.f32 %v195, 0.5
    %v262 = vmul.f32 %v200, 0.5
    %v263 = vmul.f32 %v205, 0.5
    %v264 = vmul.f32 %v210, 0.5
    %v265 = vmul.f32 %v215, 0.5
    %v266 = vmul.f32 %v220, 0.5
    %v267 = vmul.f32 %v225, 0.5
    %v268 = vmul.f32 %v230, 0.5
    %v269 = vmul.f32 %v235, 0.5
    %v270 = vmul.f32 %v240, 0.5
    %v271 = vmul.f32 %v245, 0.5
    %v272 = vmul.f32 %v250, 0.5
    %v273 = vmul.f32 %v255, 0.5
    %v274 = vmul.f32 %v180, 0.70710677
    %v275 = vmul.f32 %v185, 0.70710677
    %v276 = vmul.f32 %v190, 0.70710677
    %v277 = vmul.f32 %v195, 0.70710677
    %v278 = vmul.f32 %v200, 0.70710677
    %v279 = vmul.f32 %v205, 0.70710677
    %v280 = vmul.f32 %v210, 0.70710677
    %v281 = vmul.f32 %v215, 0.70710677
    %v282 = vmul.f32 %v220, 0.70710677
    %v283 = vmul.f32 %v225, 0.70710677
    %v284 = vmul.f32 %v230, 0.70710677
    %v285 = vmul.f32 %v235, 0.70710677
    %v286 = vmul.f32 %v240, 0.70710677
    %v287 = vmul.f32 %v245, 0.70710677
    %v288 = vmul.f32 %v250, 0.70710677
    %v289 = vmul.f32 %v255, 0.70710677
    %vm290 = vcmp.ge.f32.partialorder %v274, 0.0
    %vm291 = vcmp.ge.f32.partialorder %v275, 0.0
    %vm292 = vcmp.ge.f32.partialorder %v276, 0.0
    %vm293 = vcmp.ge.f32.partialorder %v277, 0.0
    %vm294 = vcmp.ge.f32.partialorder %v278, 0.0
    %vm295 = vcmp.ge.f32.partialorder %v279, 0.0
    %vm296 = vcmp.ge.f32.partialorder %v280, 0.0
    %vm297 = vcmp.ge.f32.partialorder %v281, 0.0
    %vm298 = vcmp.ge.f32.partialorder %v282, 0.0
    %vm299 = vcmp.ge.f32.partialorder %v283, 0.0
    %vm300 = vcmp.ge.f32.partialorder %v284, 0.0
    %vm301 = vcmp.ge.f32.partialorder %v285, 0.0
    %vm302 = vcmp.ge.f32.partialorder %v286, 0.0
    %vm303 = vcmp.ge.f32.partialorder %v287, 0.0
    %vm304 = vcmp.ge.f32.partialorder %v288, 0.0
    %vm305 = vcmp.ge.f32.partialorder %v289, 0.0
    %v306 = vsel %vm290, 1.0, -1.0
    %v307 = vsel %vm291, 1.0, -1.0
    %v308 = vsel %vm292, 1.0, -1.0
    %v309 = vsel %vm293, 1.0, -1.0
    %v310 = vsel %vm294, 1.0, -1.0
    %v311 = vsel %vm295, 1.0, -1.0
    %v312 = vsel %vm296, 1.0, -1.0
    %v313 = vsel %vm297, 1.0, -1.0
    %v314 = vsel %vm298, 1.0, -1.0
    %v315 = vsel %vm299, 1.0, -1.0
    %v316 = vsel %vm300, 1.0, -1.0
    %v317 = vsel %vm301, 1.0, -1.0
    %v318 = vsel %vm302, 1.0, -1.0
    %v319 = vsel %vm303, 1.0, -1.0
    %v320 = vsel %vm304, 1.0, -1.0
    %v321 = vsel %vm305, 1.0, -1.0
    %v322 = vand.u32 2147483647, %v274
    %v323 = vand.u32 2147483647, %v275
    %v324 = vand.u32 2147483647, %v276
    %v325 = vand.u32 2147483647, %v277
    %v326 = vand.u32 2147483647, %v278
    %v327 = vand.u32 2147483647, %v279
    %v328 = vand.u32 2147483647, %v280
    %v329 = vand.u32 2147483647, %v281
    %v330 = vand.u32 2147483647, %v282
    %v331 = vand.u32 2147483647, %v283
    %v332 = vand.u32 2147483647, %v284
    %v333 = vand.u32 2147483647, %v285
    %v334 = vand.u32 2147483647, %v286
    %v335 = vand.u32 2147483647, %v287
    %v336 = vand.u32 2147483647, %v288
    %v337 = vand.u32 2147483647, %v289
    %v338 = vmul.f32 %v322, 0.3275911
    %v339 = vmul.f32 %v323, 0.3275911
    %v340 = vmul.f32 %v324, 0.3275911
    %v341 = vmul.f32 %v325, 0.3275911
    %v342 = vmul.f32 %v326, 0.3275911
    %v343 = vmul.f32 %v327, 0.3275911
    %v344 = vmul.f32 %v328, 0.3275911
    %v345 = vmul.f32 %v329, 0.3275911
    %v346 = vmul.f32 %v330, 0.3275911
    %v347 = vmul.f32 %v331, 0.3275911
    %v348 = vmul.f32 %v332, 0.3275911
    %v349 = vmul.f32 %v333, 0.3275911
    %v350 = vmul.f32 %v334, 0.3275911
    %v351 = vmul.f32 %v335, 0.3275911
    %v352 = vmul.f32 %v336, 0.3275911
    %v353 = vmul.f32 %v337, 0.3275911
    %v354 = vadd.f32 %v338, 1.0
    %v355 = vadd.f32 %v339, 1.0
    %v356 = vadd.f32 %v340, 1.0
    %v357 = vadd.f32 %v341, 1.0
    %v358 = vadd.f32 %v342, 1.0
    %v359 = vadd.f32 %v343, 1.0
    %v360 = vadd.f32 %v344, 1.0
    %v361 = vadd.f32 %v345, 1.0
    %v362 = vadd.f32 %v346, 1.0
    %v363 = vadd.f32 %v347, 1.0
    %v364 = vadd.f32 %v348, 1.0
    %v365 = vadd.f32 %v349, 1.0
    %v366 = vadd.f32 %v350, 1.0
    %v367 = vadd.f32 %v351, 1.0
    %v368 = vadd.f32 %v352, 1.0
    %v369 = vadd.f32 %v353, 1.0
    %v370 = vrcp.pop %v354
    %v371 = vmul.f32 1.0, %v370
    %v372 = vrcp.pop %v355
    %v373 = vmul.f32 1.0, %v372
    %v374 = vrcp.pop %v356
    %v375 = vmul.f32 1.0, %v374
    %v376 = vrcp.pop %v357
    %v377 = vmul.f32 1.0, %v376
    %v378 = vrcp.pop %v358
    %v379 = vmul.f32 1.0, %v378
    %v380 = vrcp.pop %v359
    %v381 = vmul.f32 1.0, %v380
    %v382 = vrcp.pop %v360
    %v383 = vmul.f32 1.0, %v382
    %v384 = vrcp.pop %v361
    %v385 = vmul.f32 1.0, %v384
    %v386 = vrcp.pop %v362
    %v387 = vmul.f32 1.0, %v386
    %v388 = vrcp.pop %v363
    %v389 = vmul.f32 1.0, %v388
    %v390 = vrcp.pop %v364
    %v391 = vmul.f32 1.0, %v390
    %v392 = vrcp.pop %v365
    %v393 = vmul.f32 1.0, %v392
    %v394 = vrcp.pop %v366
    %v395 = vmul.f32 1.0, %v394
    %v396 = vrcp.pop %v367
    %v397 = vmul.f32 1.0, %v396
    %v398 = vrcp.pop %v368
    %v399 = vmul.f32 1.0, %v398
    %v400 = vrcp.pop %v369
    %v401 = vmul.f32 1.0, %v400
    %v402 = vmul.f32 %v371, 1.0614054
    %v403 = vmul.f32 %v373, 1.0614054
    %v404 = vmul.f32 %v375, 1.0614054
    %v405 = vmul.f32 %v377, 1.0614054
    %v406 = vmul.f32 %v379, 1.0614054
    %v407 = vmul.f32 %v381, 1.0614054
    %v408 = vmul.f32 %v383, 1.0614054
    %v409 = vmul.f32 %v385, 1.0614054
    %v410 = vmul.f32 %v387, 1.0614054
    %v411 = vmul.f32 %v389, 1.0614054
    %v412 = vmul.f32 %v391, 1.0614054
    %v413 = vmul.f32 %v393, 1.0614054
    %v414 = vmul.f32 %v395, 1.0614054
    %v415 = vmul.f32 %v397, 1.0614054
    %v416 = vmul.f32 %v399, 1.0614054
    %v417 = vmul.f32 %v401, 1.0614054
    %v418 = vadd.f32 %v402, -1.4531521
    %v419 = vadd.f32 %v403, -1.4531521
    %v420 = vadd.f32 %v404, -1.4531521
    %v421 = vadd.f32 %v405, -1.4531521
    %v422 = vadd.f32 %v406, -1.4531521
    %v423 = vadd.f32 %v407, -1.4531521
    %v424 = vadd.f32 %v408, -1.4531521
    %v425 = vadd.f32 %v409, -1.4531521
    %v426 = vadd.f32 %v410, -1.4531521
    %v427 = vadd.f32 %v411, -1.4531521
    %v428 = vadd.f32 %v412, -1.4531521
    %v429 = vadd.f32 %v413, -1.4531521
    %v430 = vadd.f32 %v414, -1.4531521
    %v431 = vadd.f32 %v415, -1.4531521
    %v432 = vadd.f32 %v416, -1.4531521
    %v433 = vadd.f32 %v417, -1.4531521
    %v434 = vmul.f32 %v418, %v371
    %v435 = vmul.f32 %v419, %v373
    %v436 = vmul.f32 %v420, %v375
    %v437 = vmul.f32 %v421, %v377
    %v438 = vmul.f32 %v422, %v379
    %v439 = vmul.f32 %v423, %v381
    %v440 = vmul.f32 %v424, %v383
    %v441 = vmul.f32 %v425, %v385
    %v442 = vmul.f32 %v426, %v387
    %v443 = vmul.f32 %v427, %v389
    %v444 = vmul.f32 %v428, %v391
    %v445 = vmul.f32 %v429, %v393
    %v446 = vmul.f32 %v430, %v395
    %v447 = vmul.f32 %v431, %v397
    %v448 = vmul.f32 %v432, %v399
    %v449 = vmul.f32 %v433, %v401
    %v450 = vadd.f32 %v434, 1.4214138
    %v451 = vadd.f32 %v435, 1.4214138
    %v452 = vadd.f32 %v436, 1.4214138
    %v453 = vadd.f32 %v437, 1.4214138
    %v454 = vadd.f32 %v438, 1.4214138
    %v455 = vadd.f32 %v439, 1.4214138
    %v456 = vadd.f32 %v440, 1.4214138
    %v457 = vadd.f32 %v441, 1.4214138
    %v458 = vadd.f32 %v442, 1.4214138
    %v459 = vadd.f32 %v443, 1.4214138
    %v460 = vadd.f32 %v444, 1.4214138
    %v461 = vadd.f32 %v445, 1.4214138
    %v462 = vadd.f32 %v446, 1.4214138
    %v463 = vadd.f32 %v447, 1.4214138
    %v464 = vadd.f32 %v448, 1.4214138
    %v465 = vadd.f32 %v449, 1.4214138
    %v466 = vmul.f32 %v450, %v371
    %v467 = vmul.f32 %v451, %v373
    %v468 = vmul.f32 %v452, %v375
    %v469 = vmul.f32 %v453, %v377
    %v470 = vmul.f32 %v454, %v379
    %v471 = vmul.f32 %v455, %v381
    %v472 = vmul.f32 %v456, %v383
    %v473 = vmul.f32 %v457, %v385
    %v474 = vmul.f32 %v458, %v387
    %v475 = vmul.f32 %v459, %v389
    %v476 = vmul.f32 %v460, %v391
    %v477 = vmul.f32 %v461, %v393
    %v478 = vmul.f32 %v462, %v395
    %v479 = vmul.f32 %v463, %v397
    %v480 = vmul.f32 %v464, %v399
    %v481 = vmul.f32 %v465, %v401
    %v482 = vadd.f32 %v466, -0.28449672
    %v483 = vadd.f32 %v467, -0.28449672
    %v484 = vadd.f32 %v468, -0.28449672
    %v485 = vadd.f32 %v469, -0.28449672
    %v486 = vadd.f32 %v470, -0.28449672
    %v487 = vadd.f32 %v471, -0.28449672
    %v488 = vadd.f32 %v472, -0.28449672
    %v489 = vadd.f32 %v473, -0.28449672
    %v490 = vadd.f32 %v474, -0.28449672
    %v491 = vadd.f32 %v475, -0.28449672
    %v492 = vadd.f32 %v476, -0.28449672
    %v493 = vadd.f32 %v477, -0.28449672
    %v494 = vadd.f32 %v478, -0.28449672
    %v495 = vadd.f32 %v479, -0.28449672
    %v496 = vadd.f32 %v480, -0.28449672
    %v497 = vadd.f32 %v481, -0.28449672
    %v498 = vmul.f32 %v482, %v371
    %v499 = vmul.f32 %v483, %v373
    %v500 = vmul.f32 %v484, %v375
    %v501 = vmul.f32 %v485, %v377
    %v502 = vmul.f32 %v486, %v379
    %v503 = vmul.f32 %v487, %v381
    %v504 = vmul.f32 %v488, %v383
    %v505 = vmul.f32 %v489, %v385
    %v506 = vmul.f32 %v490, %v387
    %v507 = vmul.f32 %v491, %v389
    %v508 = vmul.f32 %v492, %v391
    %v509 = vmul.f32 %v493, %v393
    %v510 = vmul.f32 %v494, %v395
    %v511 = vmul.f32 %v495, %v397
    %v512 = vmul.f32 %v496, %v399
    %v513 = vmul.f32 %v497, %v401
    %v514 = vadd.f32 %v498, 0.2548296
    %v515 = vadd.f32 %v499, 0.2548296
    %v516 = vadd.f32 %v500, 0.2548296
    %v517 = vadd.f32 %v501, 0.2548296
    %v518 = vadd.f32 %v502, 0.2548296
    %v519 = vadd.f32 %v503, 0.2548296
    %v520 = vadd.f32 %v504, 0.2548296
    %v521 = vadd.f32 %v505, 0.2548296
    %v522 = vadd.f32 %v506, 0.2548296
    %v523 = vadd.f32 %v507, 0.2548296
    %v524 = vadd.f32 %v508, 0.2548296
    %v525 = vadd.f32 %v509, 0.2548296
    %v526 = vadd.f32 %v510, 0.2548296
    %v527 = vadd.f32 %v511, 0.2548296
    %v528 = vadd.f32 %v512, 0.2548296
    %v529 = vadd.f32 %v513, 0.2548296
    %v530 = vmul.f32 %v514, %v371
    %v531 = vmul.f32 %v515, %v373
    %v532 = vmul.f32 %v516, %v375
    %v533 = vmul.f32 %v517, %v377
    %v534 = vmul.f32 %v518, %v379
    %v535 = vmul.f32 %v519, %v381
    %v536 = vmul.f32 %v520, %v383
    %v537 = vmul.f32 %v521, %v385
    %v538 = vmul.f32 %v522, %v387
    %v539 = vmul.f32 %v523, %v389
    %v540 = vmul.f32 %v524, %v391
    %v541 = vmul.f32 %v525, %v393
    %v542 = vmul.f32 %v526, %v395
    %v543 = vmul.f32 %v527, %v397
    %v544 = vmul.f32 %v528, %v399
    %v545 = vmul.f32 %v529, %v401
    %v546 = vsub.f32 0.0, %v322
    %v547 = vsub.f32 0.0, %v323
    %v548 = vsub.f32 0.0, %v324
    %v549 = vsub.f32 0.0, %v325
    %v550 = vsub.f32 0.0, %v326
    %v551 = vsub.f32 0.0, %v327
    %v552 = vsub.f32 0.0, %v328
    %v553 = vsub.f32 0.0, %v329
    %v554 = vsub.f32 0.0, %v330
    %v555 = vsub.f32 0.0, %v331
    %v556 = vsub.f32 0.0, %v332
    %v557 = vsub.f32 0.0, %v333
    %v558 = vsub.f32 0.0, %v334
    %v559 = vsub.f32 0.0, %v335
    %v560 = vsub.f32 0.0, %v336
    %v561 = vsub.f32 0.0, %v337
    %v562 = vmul.f32 %v546, %v322
    %v563 = vmul.f32 %v547, %v323
    %v564 = vmul.f32 %v548, %v324
    %v565 = vmul.f32 %v549, %v325
    %v566 = vmul.f32 %v550, %v326
    %v567 = vmul.f32 %v551, %v327
    %v568 = vmul.f32 %v552, %v328
    %v569 = vmul.f32 %v553, %v329
    %v570 = vmul.f32 %v554, %v330
    %v571 = vmul.f32 %v555, %v331
    %v572 = vmul.f32 %v556, %v332
    %v573 = vmul.f32 %v557, %v333
    %v574 = vmul.f32 %v558, %v334
    %v575 = vmul.f32 %v559, %v335
    %v576 = vmul.f32 %v560, %v336
    %v577 = vmul.f32 %v561, %v337
    %v578 = vmul.f32 %v562, 1.442695
    %v579 = vpow.pop %v578
    %v580 = vmul.f32 %v563, 1.442695
    %v581 = vpow.pop %v580
    %v582 = vmul.f32 %v564, 1.442695
    %v583 = vpow.pop %v582
    %v584 = vmul.f32 %v565, 1.442695
    %v585 = vpow.pop %v584
    %v586 = vmul.f32 %v566, 1.442695
    %v587 = vpow.pop %v586
    %v588 = vmul.f32 %v567, 1.442695
    %v589 = vpow.pop %v588
    %v590 = vmul.f32 %v568, 1.442695
    %v591 = vpow.pop %v590
    %v592 = vmul.f32 %v569, 1.442695
    %v593 = vpow.pop %v592
    %v594 = vmul.f32 %v570, 1.442695
    %v595 = vpow.pop %v594
    %v596 = vmul.f32 %v571, 1.442695
    %v597 = vpow.pop %v596
    %v598 = vmul.f32 %v572, 1.442695
    %v599 = vpow.pop %v598
    %v600 = vmul.f32 %v573, 1.442695
    %v601 = vpow.pop %v600
    %v602 = vmul.f32 %v574, 1.442695
    %v603 = vpow.pop %v602
    %v604 = vmul.f32 %v575, 1.442695
    %v605 = vpow.pop %v604
    %v606 = vmul.f32 %v576, 1.442695
    %v607 = vpow.pop %v606
    %v608 = vmul.f32 %v577, 1.442695
    %v609 = vpow.pop %v608
    %v610 = vmul.f32 %v530, %v579
    %v611 = vmul.f32 %v531, %v581
    %v612 = vmul.f32 %v532, %v583
    %v613 = vmul.f32 %v533, %v585
    %v614 = vmul.f32 %v534, %v587
    %v615 = vmul.f32 %v535, %v589
    %v616 = vmul.f32 %v536, %v591
    %v617 = vmul.f32 %v537, %v593
    %v618 = vmul.f32 %v538, %v595
    %v619 = vmul.f32 %v539, %v597
    %v620 = vmul.f32 %v540, %v599
    %v621 = vmul.f32 %v541, %v601
    %v622 = vmul.f32 %v542, %v603
    %v623 = vmul.f32 %v543, %v605
    %v624 = vmul.f32 %v544, %v607
    %v625 = vmul.f32 %v545, %v609
    %v626 = vsub.f32 1.0, %v610
    %v627 = vsub.f32 1.0, %v611
    %v628 = vsub.f32 1.0, %v612
    %v629 = vsub.f32 1.0, %v613
    %v630 = vsub.f32 1.0, %v614
    %v631 = vsub.f32 1.0, %v615
    %v632 = vsub.f32 1.0, %v616
    %v633 = vsub.f32 1.0, %v617
    %v634 = vsub.f32 1.0, %v618
    %v635 = vsub.f32 1.0, %v619
    %v636 = vsub.f32 1.0, %v620
    %v637 = vsub.f32 1.0, %v621
    %v638 = vsub.f32 1.0, %v622
    %v639 = vsub.f32 1.0, %v623
    %v640 = vsub.f32 1.0, %v624
    %v641 = vsub.f32 1.0, %v625
    %v642 = vmul.f32 %v306, %v626
    %v643 = vmul.f32 %v307, %v627
    %v644 = vmul.f32 %v308, %v628
    %v645 = vmul.f32 %v309, %v629
    %v646 = vmul.f32 %v310, %v630
    %v647 = vmul.f32 %v311, %v631
    %v648 = vmul.f32 %v312, %v632
    %v649 = vmul.f32 %v313, %v633
    %v650 = vmul.f32 %v314, %v634
    %v651 = vmul.f32 %v315, %v635
    %v652 = vmul.f32 %v316, %v636
    %v653 = vmul.f32 %v317, %v637
    %v654 = vmul.f32 %v318, %v638
    %v655 = vmul.f32 %v319, %v639
    %v656 = vmul.f32 %v320, %v640
    %v657 = vmul.f32 %v321, %v641
    %v658 = vadd.f32 %v642, 1.0
    %v659 = vadd.f32 %v643, 1.0
    %v660 = vadd.f32 %v644, 1.0
    %v661 = vadd.f32 %v645, 1.0
    %v662 = vadd.f32 %v646, 1.0
    %v663 = vadd.f32 %v647, 1.0
    %v664 = vadd.f32 %v648, 1.0
    %v665 = vadd.f32 %v649, 1.0
    %v666 = vadd.f32 %v650, 1.0
    %v667 = vadd.f32 %v651, 1.0
    %v668 = vadd.f32 %v652, 1.0
    %v669 = vadd.f32 %v653, 1.0
    %v670 = vadd.f32 %v654, 1.0
    %v671 = vadd.f32 %v655, 1.0
    %v672 = vadd.f32 %v656, 1.0
    %v673 = vadd.f32 %v657, 1.0
    %v674 = vmul.f32 %v258, %v658
    %v675 = vmul.f32 %v259, %v659
    %v676 = vmul.f32 %v260, %v660
    %v677 = vmul.f32 %v261, %v661
    %v678 = vmul.f32 %v262, %v662
    %v679 = vmul.f32 %v263, %v663
    %v680 = vmul.f32 %v264, %v664
    %v681 = vmul.f32 %v265, %v665
    %v682 = vmul.f32 %v266, %v666
    %v683 = vmul.f32 %v267, %v667
    %v684 = vmul.f32 %v268, %v668
    %v685 = vmul.f32 %v269, %v669
    %v686 = vmul.f32 %v270, %v670
    %v687 = vmul.f32 %v271, %v671
    %v688 = vmul.f32 %v272, %v672
    %v689 = vmul.f32 %v273, %v673
    %v690 = vld [vmem:[%s3] sm:$0xff]
    %v691 = vld [vmem:[%s3 + $0x8] sm:$0xff]
    %v692 = vld [vmem:[%s3 + $0x10] sm:$0xff]
    %v693 = vld [vmem:[%s3 + $0x18] sm:$0xff]
    %v694 = vld [vmem:[%s3 + $0x20] sm:$0xff]
    %v695 = vld [vmem:[%s3 + $0x28] sm:$0xff]
    %v696 = vld [vmem:[%s3 + $0x30] sm:$0xff]
    %v697 = vld [vmem:[%s3 + $0x38] sm:$0xff]
    %v698 = vld [vmem:[%s3 + $0x40] sm:$0xff]
    %v699 = vld [vmem:[%s3 + $0x48] sm:$0xff]
    %v700 = vld [vmem:[%s3 + $0x50] sm:$0xff]
    %v701 = vld [vmem:[%s3 + $0x58] sm:$0xff]
    %v702 = vld [vmem:[%s3 + $0x60] sm:$0xff]
    %v703 = vld [vmem:[%s3 + $0x68] sm:$0xff]
    %v704 = vld [vmem:[%s3 + $0x70] sm:$0xff]
    %v705 = vld [vmem:[%s3 + $0x78] sm:$0xff]
    %v706 = vld [vmem:[%s3 + $0x80] sm:$0xff]
    %v707 = vld [vmem:[%s3 + $0x88] sm:$0xff]
    %v708 = vld [vmem:[%s3 + $0x90] sm:$0xff]
    %v709 = vld [vmem:[%s3 + $0x98] sm:$0xff]
    %v710 = vld [vmem:[%s3 + $0xa0] sm:$0xff]
    %v711 = vld [vmem:[%s3 + $0xa8] sm:$0xff]
    %v712 = vld [vmem:[%s3 + $0xb0] sm:$0xff]
    %v713 = vld [vmem:[%s3 + $0xb8] sm:$0xff]
    %v714 = vld [vmem:[%s3 + $0xc0] sm:$0xff]
    %v715 = vld [vmem:[%s3 + $0xc8] sm:$0xff]
    %v716 = vld [vmem:[%s3 + $0xd0] sm:$0xff]
    %v717 = vld [vmem:[%s3 + $0xd8] sm:$0xff]
    %v718 = vld [vmem:[%s3 + $0xe0] sm:$0xff]
    %v719 = vld [vmem:[%s3 + $0xe8] sm:$0xff]
    %v720 = vld [vmem:[%s3 + $0xf0] sm:$0xff]
    %v721 = vld [vmem:[%s3 + $0xf8] sm:$0xff]
    %v722 = vld [vmem:[%s3 + $0x100] sm:$0xff]
    %v723 = vld [vmem:[%s3 + $0x108] sm:$0xff]
    %v724 = vld [vmem:[%s3 + $0x110] sm:$0xff]
    %v725 = vld [vmem:[%s3 + $0x118] sm:$0xff]
    %726 = vmatprep.subr.mxu0 0.0
    %727 = vmatpush1.msra.mxu0 %v674
    %728 = vmatprep.subr.mxu0 0.0
    %729 = vmatpush1.msra.mxu0 %v675
    %730 = vmatprep.subr.mxu0 0.0
    %731 = vmatpush1.msra.mxu0 %v676
    %732 = vmatprep.subr.mxu0 0.0
    %733 = vmatpush1.msra.mxu0 %v677
    %734 = vmatprep.subr.mxu0 0.0
    %735 = vmatpush1.msra.mxu0 %v678
    %736 = vmatprep.subr.mxu0 0.0
    %737 = vmatpush1.msra.mxu0 %v679
    %738 = vmatprep.subr.mxu0 0.0
    %739 = vmatpush1.msra.mxu0 %v680
    %740 = vmatprep.subr.mxu0 0.0
    %741 = vmatpush1.msra.mxu0 %v681
    %742 = vmatprep.subr.mxu0 0.0
    %743 = vmatpush1.msra.mxu0 %v682
    %744 = vmatprep.subr.mxu0 0.0
    %745 = vmatpush1.msra.mxu0 %v683
    %746 = vmatprep.subr.mxu0 0.0
    %747 = vmatpush1.msra.mxu0 %v684
    %748 = vmatprep.subr.mxu0 0.0
    %749 = vmatpush1.msra.mxu0 %v685
    %750 = vmatprep.subr.mxu0 0.0
    %751 = vmatpush1.msra.mxu0 %v686
    %752 = vmatprep.subr.mxu0 0.0
    %753 = vmatpush1.msra.mxu0 %v687
    %754 = vmatprep.subr.mxu0 0.0
    %755 = vmatpush1.msra.mxu0 %v688
    %756 = vmatprep.subr.mxu0 0.0
    %757 = vmatpush1.msra.mxu0 %v689
    %758 = vmatprep.subr.mxu0 0.0
    %759 = vmatpush1.msra.mxu0 0.0
    %760 = vmatprep.subr.mxu0 0.0
    %761 = vmatpush1.msra.mxu0 0.0
    %762 = vmatprep.subr.mxu0 0.0
    %763 = vmatpush1.msra.mxu0 0.0
    %764 = vmatprep.subr.mxu0 0.0
    %765 = vmatpush1.msra.mxu0 0.0
    %766 = vmatprep.subr.mxu0 0.0
    %767 = vmatpush1.msra.mxu0 0.0
    %768 = vmatprep.subr.mxu0 0.0
    %769 = vmatpush1.msra.mxu0 0.0
    %770 = vmatprep.subr.mxu0 0.0
    %771 = vmatpush1.msra.mxu0 0.0
    %772 = vmatprep.subr.mxu0 0.0
    %773 = vmatpush1.msra.mxu0 0.0
    %774 = vmatprep.subr.mxu0 0.0
    %775 = vmatpush1.msra.mxu0 0.0
    %776 = vmatprep.subr.mxu0 0.0
    %777 = vmatpush1.msra.mxu0 0.0
    %778 = vmatprep.subr.mxu0 0.0
    %779 = vmatpush1.msra.mxu0 0.0
    %780 = vmatprep.subr.mxu0 0.0
    %781 = vmatpush1.msra.mxu0 0.0
    %782 = vmatprep.subr.mxu0 0.0
    %783 = vmatpush1.msra.mxu0 0.0
    %784 = vmatprep.subr.mxu0 0.0
    %785 = vmatpush1.msra.mxu0 0.0
    %786 = vmatprep.subr.mxu0 0.0
    %787 = vmatpush1.msra.mxu0 0.0
    %788 = vmatprep.subr.mxu0 0.0
    %789 = vmatpush1.msra.mxu0 0.0
    %790 = vmatprep.mubr.f32.mxu0 0.0
    %791 = vmatmul.mubr.f32.gmra.mrb[0].mxu0 %v690
    %v792 = vpop.f32.mrb[0].mxu0
    %v793 = vadd.f32 0.0, %v792
    %v794 = vpop.f32.mrb[0].mxu0
    %795 = vmatprep.mubr.f32.mxu0 0.0
    %796 = vmatmul.mubr.f32.gmra.mrb[0].mxu0 %v691
    %v797 = vpop.f32.mrb[0].mxu0
    %v798 = vadd.f32 0.0, %v797
    %v799 = vpop.f32.mrb[0].mxu0
    %800 = vmatprep.mubr.f32.mxu0 0.0
    %801 = vmatmul.mubr.f32.gmra.mrb[0].mxu0 %v692
    %v802 = vpop.f32.mrb[0].mxu0
    %v803 = vadd.f32 0.0, %v802
    %v804 = vpop.f32.mrb[0].mxu0
    %805 = vmatprep.mubr.f32.mxu0 0.0
    %806 = vmatmul.mubr.f32.gmra.mrb[0].mxu0 %v693
    %v807 = vpop.f32.mrb[0].mxu0
    %v808 = vadd.f32 0.0, %v807
    %v809 = vpop.f32.mrb[0].mxu0
    %810 = vmatprep.mubr.f32.mxu0 0.0
    %811 = vmatmul.mubr.f32.gmra.mrb[0].mxu0 %v694
    %v812 = vpop.f32.mrb[0].mxu0
    %v813 = vadd.f32 0.0, %v812
    %v814 = vpop.f32.mrb[0].mxu0
    %815 = vmatprep.mubr.f32.mxu0 0.0
    %816 = vmatmul.mubr.f32.gmra.mrb[0].mxu0 %v695
    %v817 = vpop.f32.mrb[0].mxu0
    %v818 = vadd.f32 0.0, %v817
    %v819 = vpop.f32.mrb[0].mxu0
    %820 = vmatprep.mubr.f32.mxu0 0.0
    %821 = vmatmul.mubr.f32.gmra.mrb[0].mxu0 %v696
    %v822 = vpop.f32.mrb[0].mxu0
    %v823 = vadd.f32 0.0, %v822
    %v824 = vpop.f32.mrb[0].mxu0
    %825 = vmatprep.mubr.f32.mxu0 0.0
    %826 = vmatmul.mubr.f32.gmra.mrb[0].mxu0 %v697
    %v827 = vpop.f32.mrb[0].mxu0
    %v828 = vadd.f32 0.0, %v827
    %v829 = vpop.f32.mrb[0].mxu0
    %830 = vmatprep.mubr.f32.mxu0 0.0
    %831 = vmatmul.mubr.f32.gmra.mrb[0].mxu0 %v698
    %v832 = vpop.f32.mrb[0].mxu0
    %v833 = vadd.f32 0.0, %v832
    %v834 = vpop.f32.mrb[0].mxu0
    %835 = vmatprep.mubr.f32.mxu0 0.0
    %836 = vmatmul.mubr.f32.gmra.mrb[0].mxu0 %v699
    %v837 = vpop.f32.mrb[0].mxu0
    %v838 = vadd.f32 0.0, %v837
    %v839 = vpop.f32.mrb[0].mxu0
    %840 = vmatprep.mubr.f32.mxu0 0.0
    %841 = vmatmul.mubr.f32.gmra.mrb[0].mxu0 %v700
    %v842 = vpop.f32.mrb[0].mxu0
    %v843 = vadd.f32 0.0, %v842
    %v844 = vpop.f32.mrb[0].mxu0
    %845 = vmatprep.mubr.f32.mxu0 0.0
    %846 = vmatmul.mubr.f32.gmra.mrb[0].mxu0 %v701
    %v847 = vpop.f32.mrb[0].mxu0
    %v848 = vadd.f32 0.0, %v847
    %v849 = vpop.f32.mrb[0].mxu0
    %850 = vmatprep.mubr.f32.mxu0 0.0
    %851 = vmatmul.mubr.f32.gmra.mrb[0].mxu0 %v702
    %v852 = vpop.f32.mrb[0].mxu0
    %v853 = vadd.f32 0.0, %v852
    %v854 = vpop.f32.mrb[0].mxu0
    %855 = vmatprep.mubr.f32.mxu0 0.0
    %856 = vmatmul.mubr.f32.gmra.mrb[0].mxu0 %v703
    %v857 = vpop.f32.mrb[0].mxu0
    %v858 = vadd.f32 0.0, %v857
    %v859 = vpop.f32.mrb[0].mxu0
    %860 = vmatprep.mubr.f32.mxu0 0.0
    %861 = vmatmul.mubr.f32.gmra.mrb[0].mxu0 %v704
    %v862 = vpop.f32.mrb[0].mxu0
    %v863 = vadd.f32 0.0, %v862
    %v864 = vpop.f32.mrb[0].mxu0
    %865 = vmatprep.mubr.f32.mxu0 0.0
    %866 = vmatmul.mubr.f32.gmra.mrb[0].mxu0 %v705
    %v867 = vpop.f32.mrb[0].mxu0
    %v868 = vadd.f32 0.0, %v867
    %v869 = vpop.f32.mrb[0].mxu0
    %870 = vmatprep.mubr.f32.mxu0 0.0
    %871 = vmatmul.mubr.f32.gmra.mrb[0].mxu0 %v706
    %v872 = vpop.f32.mrb[0].mxu0
    %v873 = vadd.f32 0.0, %v872
    %v874 = vpop.f32.mrb[0].mxu0
    %875 = vmatprep.mubr.f32.mxu0 0.0
    %876 = vmatmul.mubr.f32.gmra.mrb[0].mxu0 %v707
    %v877 = vpop.f32.mrb[0].mxu0
    %v878 = vadd.f32 0.0, %v877
    %v879 = vpop.f32.mrb[0].mxu0
    %880 = vmatprep.mubr.f32.mxu0 0.0
    %881 = vmatmul.mubr.f32.gmra.mrb[0].mxu0 %v708
    %v882 = vpop.f32.mrb[0].mxu0
    %v883 = vadd.f32 0.0, %v882
    %v884 = vpop.f32.mrb[0].mxu0
    %885 = vmatprep.mubr.f32.mxu0 0.0
    %886 = vmatmul.mubr.f32.gmra.mrb[0].mxu0 %v709
    %v887 = vpop.f32.mrb[0].mxu0
    %v888 = vadd.f32 0.0, %v887
    %v889 = vpop.f32.mrb[0].mxu0
    %890 = vmatprep.mubr.f32.mxu0 0.0
    %891 = vmatmul.mubr.f32.gmra.mrb[0].mxu0 %v710
    %v892 = vpop.f32.mrb[0].mxu0
    %v893 = vadd.f32 0.0, %v892
    %v894 = vpop.f32.mrb[0].mxu0
    %895 = vmatprep.mubr.f32.mxu0 0.0
    %896 = vmatmul.mubr.f32.gmra.mrb[0].mxu0 %v711
    %v897 = vpop.f32.mrb[0].mxu0
    %v898 = vadd.f32 0.0, %v897
    %v899 = vpop.f32.mrb[0].mxu0
    %900 = vmatprep.mubr.f32.mxu0 0.0
    %901 = vmatmul.mubr.f32.gmra.mrb[0].mxu0 %v712
    %v902 = vpop.f32.mrb[0].mxu0
    %v903 = vadd.f32 0.0, %v902
    %v904 = vpop.f32.mrb[0].mxu0
    %905 = vmatprep.mubr.f32.mxu0 0.0
    %906 = vmatmul.mubr.f32.gmra.mrb[0].mxu0 %v713
    %v907 = vpop.f32.mrb[0].mxu0
    %v908 = vadd.f32 0.0, %v907
    %v909 = vpop.f32.mrb[0].mxu0
    %910 = vmatprep.mubr.f32.mxu0 0.0
    %911 = vmatmul.mubr.f32.gmra.mrb[0].mxu0 %v714
    %v912 = vpop.f32.mrb[0].mxu0
    %v913 = vadd.f32 0.0, %v912
    %v914 = vpop.f32.mrb[0].mxu0
    %915 = vmatprep.mubr.f32.mxu0 0.0
    %916 = vmatmul.mubr.f32.gmra.mrb[0].mxu0 %v715
    %v917 = vpop.f32.mrb[0].mxu0
    %v918 = vadd.f32 0.0, %v917
    %v919 = vpop.f32.mrb[0].mxu0
    %920 = vmatprep.mubr.f32.mxu0 0.0
    %921 = vmatmul.mubr.f32.gmra.mrb[0].mxu0 %v716
    %v922 = vpop.f32.mrb[0].mxu0
    %v923 = vadd.f32 0.0, %v922
    %v924 = vpop.f32.mrb[0].mxu0
    %925 = vmatprep.mubr.f32.mxu0 0.0
    %926 = vmatmul.mubr.f32.gmra.mrb[0].mxu0 %v717
    %v927 = vpop.f32.mrb[0].mxu0
    %v928 = vadd.f32 0.0, %v927
    %v929 = vpop.f32.mrb[0].mxu0
    %930 = vmatprep.mubr.f32.mxu0 0.0
    %931 = vmatmul.mubr.f32.gmra.mrb[0].mxu0 %v718
    %v932 = vpop.f32.mrb[0].mxu0
    %v933 = vadd.f32 0.0, %v932
    %v934 = vpop.f32.mrb[0].mxu0
    %935 = vmatprep.mubr.f32.mxu0 0.0
    %936 = vmatmul.mubr.f32.gmra.mrb[0].mxu0 %v719
    %v937 = vpop.f32.mrb[0].mxu0
    %v938 = vadd.f32 0.0, %v937
    %v939 = vpop.f32.mrb[0].mxu0
    %940 = vmatprep.mubr.f32.mxu0 0.0
    %941 = vmatmul.mubr.f32.gmra.mrb[0].mxu0 %v720
    %v942 = vpop.f32.mrb[0].mxu0
    %v943 = vadd.f32 0.0, %v942
    %v944 = vpop.f32.mrb[0].mxu0
    %945 = vmatprep.mubr.f32.mxu0 0.0
    %946 = vmatmul.mubr.f32.gmra.mrb[0].mxu0 %v721
    %v947 = vpop.f32.mrb[0].mxu0
    %v948 = vadd.f32 0.0, %v947
    %v949 = vpop.f32.mrb[0].mxu0
    %950 = vmatprep.mubr.f32.mxu0 0.0
    %951 = vmatmul.mubr.f32.gmra.mrb[0].mxu0 %v722
    %v952 = vpop.f32.mrb[0].mxu0
    %v953 = vadd.f32 0.0, %v952
    %v954 = vpop.f32.mrb[0].mxu0
    %955 = vmatprep.mubr.f32.mxu0 0.0
    %956 = vmatmul.mubr.f32.gmra.mrb[0].mxu0 %v723
    %v957 = vpop.f32.mrb[0].mxu0
    %v958 = vadd.f32 0.0, %v957
    %v959 = vpop.f32.mrb[0].mxu0
    %960 = vmatprep.mubr.f32.mxu0 0.0
    %961 = vmatmul.mubr.f32.gmra.mrb[0].mxu0 %v724
    %v962 = vpop.f32.mrb[0].mxu0
    %v963 = vadd.f32 0.0, %v962
    %v964 = vpop.f32.mrb[0].mxu0
    %965 = vmatprep.mubr.f32.mxu0 0.0
    %966 = vmatmul.mubr.f32.gmra.mrb[0].mxu0 %v725
    %v967 = vpop.f32.mrb[0].mxu0
    %v968 = vadd.f32 0.0, %v967
    %v969 = vpop.f32.mrb[0].mxu0
    %970 = vdwg.mxu0
    %vm971 = vcmask 261120
    %972 = vst.msk [vmem:[#allocation2] sm:$0xff] %vm971, %v793
    %973 = vst.msk [vmem:[#allocation2 + $0x18] sm:$0xff] %vm971, %v798
    %974 = vst.msk [vmem:[#allocation2 + $0x30] sm:$0xff] %vm971, %v803
    %975 = vst.msk [vmem:[#allocation2 + $0x48] sm:$0xff] %vm971, %v808
    %980 = vrot.lane.b32.xlu0 %v813, 32
    %v981 = vpop.permute.xlu0 %980
    %982 = vrot.lane.b32.xlu0 %v818, 32
    %v983 = vpop.permute.xlu0 %982
    %984 = vrot.lane.b32.xlu0 %v823, 32
    %v985 = vpop.permute.xlu0 %984
    %986 = vrot.lane.b32.xlu0 %v828, 32
    %v987 = vpop.permute.xlu0 %986
    %vm992 = vcmask 523520
    %993 = vst.msk [vmem:[#allocation2] sm:$0xff] %vm992, %v981
    %994 = vst.msk [vmem:[#allocation2 + $0x18] sm:$0xff] %vm992, %v983
    %995 = vst.msk [vmem:[#allocation2 + $0x30] sm:$0xff] %vm992, %v985
    %996 = vst.msk [vmem:[#allocation2 + $0x48] sm:$0xff] %vm992, %v987
    %1001 = vrot.lane.b32.xlu0 %v833, 64
    %v1002 = vpop.permute.xlu0 %1001
    %1003 = vrot.lane.b32.xlu0 %v838, 64
    %v1004 = vpop.permute.xlu0 %1003
    %1005 = vrot.lane.b32.xlu0 %v843, 64
    %v1006 = vpop.permute.xlu0 %1005
    %1007 = vrot.lane.b32.xlu0 %v848, 64
    %v1008 = vpop.permute.xlu0 %1007
    %vm1013 = vcmask 785920
    %1014 = vst.msk [vmem:[#allocation2] sm:$0xff] %vm1013, %v1002
    %1015 = vst.msk [vmem:[#allocation2 + $0x18] sm:$0xff] %vm1013, %v1004
    %1016 = vst.msk [vmem:[#allocation2 + $0x30] sm:$0xff] %vm1013, %v1006
    %1017 = vst.msk [vmem:[#allocation2 + $0x48] sm:$0xff] %vm1013, %v1008
    %1022 = vrot.lane.b32.xlu0 %v853, 96
    %v1023 = vpop.permute.xlu0 %1022
    %1024 = vrot.lane.b32.xlu0 %v858, 96
    %v1025 = vpop.permute.xlu0 %1024
    %1026 = vrot.lane.b32.xlu0 %v863, 96
    %v1027 = vpop.permute.xlu0 %1026
    %1028 = vrot.lane.b32.xlu0 %v868, 96
    %v1029 = vpop.permute.xlu0 %1028
    %vm1034 = vcmask 1048320
    %1035 = vst.msk [vmem:[#allocation2] sm:$0xff] %vm1034, %v1023
    %1036 = vst.msk [vmem:[#allocation2 + $0x18] sm:$0xff] %vm1034, %v1025
    %1037 = vst.msk [vmem:[#allocation2 + $0x30] sm:$0xff] %vm1034, %v1027
    %1038 = vst.msk [vmem:[#allocation2 + $0x48] sm:$0xff] %vm1034, %v1029
    %1039 = vst.msk [vmem:[#allocation2 + $0x8] sm:$0xff] %vm971, %v873
    %1040 = vst.msk [vmem:[#allocation2 + $0x20] sm:$0xff] %vm971, %v878
    %1041 = vst.msk [vmem:[#allocation2 + $0x38] sm:$0xff] %vm971, %v883
    %1042 = vst.msk [vmem:[#allocation2 + $0x50] sm:$0xff] %vm971, %v888
    %1047 = vrot.lane.b32.xlu0 %v893, 32
    %v1048 = vpop.permute.xlu0 %1047
    %1049 = vrot.lane.b32.xlu0 %v898, 32
    %v1050 = vpop.permute.xlu0 %1049
    %1051 = vrot.lane.b32.xlu0 %v903, 32
    %v1052 = vpop.permute.xlu0 %1051
    %1053 = vrot.lane.b32.xlu0 %v908, 32
    %v1054 = vpop.permute.xlu0 %1053
    %1059 = vst.msk [vmem:[#allocation2 + $0x8] sm:$0xff] %vm992, %v1048
    %1060 = vst.msk [vmem:[#allocation2 + $0x20] sm:$0xff] %vm992, %v1050
    %1061 = vst.msk [vmem:[#allocation2 + $0x38] sm:$0xff] %vm992, %v1052
    %1062 = vst.msk [vmem:[#allocation2 + $0x50] sm:$0xff] %vm992, %v1054
    %1067 = vrot.lane.b32.xlu0 %v913, 64
    %v1068 = vpop.permute.xlu0 %1067
    %1069 = vrot.lane.b32.xlu0 %v918, 64
    %v1070 = vpop.permute.xlu0 %1069
    %1071 = vrot.lane.b32.xlu0 %v923, 64
    %v1072 = vpop.permute.xlu0 %1071
    %1073 = vrot.lane.b32.xlu0 %v928, 64
    %v1074 = vpop.permute.xlu0 %1073
    %1079 = vst.msk [vmem:[#allocation2 + $0x8] sm:$0xff] %vm1013, %v1068
    %1080 = vst.msk [vmem:[#allocation2 + $0x20] sm:$0xff] %vm1013, %v1070
    %1081 = vst.msk [vmem:[#allocation2 + $0x38] sm:$0xff] %vm1013, %v1072
    %1082 = vst.msk [vmem:[#allocation2 + $0x50] sm:$0xff] %vm1013, %v1074
    %1087 = vrot.lane.b32.xlu0 %v933, 96
    %v1088 = vpop.permute.xlu0 %1087
    %1089 = vrot.lane.b32.xlu0 %v938, 96
    %v1090 = vpop.permute.xlu0 %1089
    %1091 = vrot.lane.b32.xlu0 %v943, 96
    %v1092 = vpop.permute.xlu0 %1091
    %1093 = vrot.lane.b32.xlu0 %v948, 96
    %v1094 = vpop.permute.xlu0 %1093
    %1099 = vst.msk [vmem:[#allocation2 + $0x8] sm:$0xff] %vm1034, %v1088
    %1100 = vst.msk [vmem:[#allocation2 + $0x20] sm:$0xff] %vm1034, %v1090
    %1101 = vst.msk [vmem:[#allocation2 + $0x38] sm:$0xff] %vm1034, %v1092
    %1102 = vst.msk [vmem:[#allocation2 + $0x50] sm:$0xff] %vm1034, %v1094
    %1103 = vst.msk [vmem:[#allocation2 + $0x10] sm:$0xff] %vm971, %v953
    %1104 = vst.msk [vmem:[#allocation2 + $0x28] sm:$0xff] %vm971, %v958
    %1105 = vst.msk [vmem:[#allocation2 + $0x40] sm:$0xff] %vm971, %v963
    %1106 = vst.msk [vmem:[#allocation2 + $0x58] sm:$0xff] %vm971, %v968
    %v1107 = vld [vmem:[#allocation2] sm:$0xff]
    %v1108 = vld [vmem:[#allocation2 + $0x8] sm:$0xff]
    %v1109 = vld [vmem:[#allocation2 + $0x10] sm:$0xff]
    %v1110 = vld [vmem:[#allocation2 + $0x18] sm:$0xff]
    %v1111 = vld [vmem:[#allocation2 + $0x20] sm:$0xff]
    %v1112 = vld [vmem:[#allocation2 + $0x28] sm:$0xff]
    %v1113 = vld [vmem:[#allocation2 + $0x30] sm:$0xff]
    %v1114 = vld [vmem:[#allocation2 + $0x38] sm:$0xff]
    %v1115 = vld [vmem:[#allocation2 + $0x40] sm:$0xff]
    %v1116 = vld [vmem:[#allocation2 + $0x48] sm:$0xff]
    %v1117 = vld [vmem:[#allocation2 + $0x50] sm:$0xff]
    %v1118 = vld [vmem:[#allocation2 + $0x58] sm:$0xff]
    %v1119 = vld [vmem:[%s4] sm:$0xff]
    %v1120 = vld [vmem:[%s4 + $0x8] sm:$0xff]
    %v1121 = vld [vmem:[%s4 + $0x10] sm:$0xff]
    %v1122 = vld [vmem:[%s4 + $0x18] sm:$0xff]
    %v1123 = vld [vmem:[%s4 + $0x20] sm:$0xff]
    %v1124 = vld [vmem:[%s4 + $0x28] sm:$0xff]
    %v1125 = vld [vmem:[%s4 + $0x30] sm:$0xff]
    %v1126 = vld [vmem:[%s4 + $0x38] sm:$0xff]
    %v1127 = vld [vmem:[%s4 + $0x40] sm:$0xff]
    %v1128 = vld [vmem:[%s4 + $0x48] sm:$0xff]
    %v1129 = vld [vmem:[%s4 + $0x50] sm:$0xff]
    %v1130 = vld [vmem:[%s4 + $0x58] sm:$0xff]
    %v1131 = vld [vmem:[%s4 + $0x60] sm:$0xff]
    %v1132 = vld [vmem:[%s4 + $0x68] sm:$0xff]
    %v1133 = vld [vmem:[%s4 + $0x70] sm:$0xff]
    %v1134 = vld [vmem:[%s4 + $0x78] sm:$0xff]
    %v1135 = vld [vmem:[%s4 + $0x80] sm:$0xff]
    %v1136 = vld [vmem:[%s4 + $0x88] sm:$0xff]
    %v1137 = vld [vmem:[%s4 + $0x90] sm:$0xff]
    %v1138 = vld [vmem:[%s4 + $0x98] sm:$0xff]
    %v1139 = vld [vmem:[%s4 + $0xa0] sm:$0xff]
    %v1140 = vld [vmem:[%s4 + $0xa8] sm:$0xff]
    %v1141 = vld [vmem:[%s4 + $0xb0] sm:$0xff]
    %v1142 = vld [vmem:[%s4 + $0xb8] sm:$0xff]
    %v1143 = vld [vmem:[%s4 + $0xc0] sm:$0xff]
    %v1144 = vld [vmem:[%s4 + $0xc8] sm:$0xff]
    %v1145 = vld [vmem:[%s4 + $0xd0] sm:$0xff]
    %v1146 = vld [vmem:[%s4 + $0xd8] sm:$0xff]
    %v1147 = vld [vmem:[%s4 + $0xe0] sm:$0xff]
    %v1148 = vld [vmem:[%s4 + $0xe8] sm:$0xff]
    %v1149 = vld [vmem:[%s4 + $0xf0] sm:$0xff]
    %v1150 = vld [vmem:[%s4 + $0xf8] sm:$0xff]
    %v1151 = vld [vmem:[%s4 + $0x100] sm:$0xff]
    %v1152 = vld [vmem:[%s4 + $0x108] sm:$0xff]
    %v1153 = vld [vmem:[%s4 + $0x110] sm:$0xff]
    %v1154 = vld [vmem:[%s4 + $0x118] sm:$0xff]
    %v1155 = vld [vmem:[%s5] sm:$0x1]
    %v1157 = vlaneseq
    %v1158 = vshrl.u32 %v1157, 7
    %v1159 = vsub.s32 0, %v1158
    %v1160 = vrot.slane %v1155, %v1159
    %v1163 = vsel %vm971, %v1109, 0
    %v1166 = vsel %vm971, %v1112, 0
    %v1169 = vsel %vm971, %v1115, 0
    %v1172 = vsel %vm971, %v1118, 0
    %1174 = vmatprep.subr.mxu0 0.0
    %1175 = vmatpush1.msra.mxu0 %v1119
    %1176 = vmatprep.subr.mxu0 0.0
    %1177 = vmatpush1.msra.mxu0 %v1120
    %1178 = vmatprep.subr.mxu0 0.0
    %1179 = vmatpush1.msra.mxu0 %v1121
    %1180 = vmatprep.subr.mxu0 0.0
    %1181 = vmatpush1.msra.mxu0 %v1122
    %1182 = vmatprep.subr.mxu0 0.0
    %1183 = vmatpush1.msra.mxu0 %v1123
    %1184 = vmatprep.subr.mxu0 0.0
    %1185 = vmatpush1.msra.mxu0 %v1124
    %1186 = vmatprep.subr.mxu0 0.0
    %1187 = vmatpush1.msra.mxu0 %v1125
    %1188 = vmatprep.subr.mxu0 0.0
    %1189 = vmatpush1.msra.mxu0 %v1126
    %1190 = vmatprep.subr.mxu0 0.0
    %1191 = vmatpush1.msra.mxu0 %v1127
    %1192 = vmatprep.subr.mxu0 0.0
    %1193 = vmatpush1.msra.mxu0 %v1128
    %1194 = vmatprep.subr.mxu0 0.0
    %1195 = vmatpush1.msra.mxu0 %v1129
    %1196 = vmatprep.subr.mxu0 0.0
    %1197 = vmatpush1.msra.mxu0 %v1130
    %1198 = vmatprep.subr.mxu0 0.0
    %1199 = vmatpush1.msra.mxu0 %v1131
    %1200 = vmatprep.subr.mxu0 0.0
    %1201 = vmatpush1.msra.mxu0 %v1132
    %1202 = vmatprep.subr.mxu0 0.0
    %1203 = vmatpush1.msra.mxu0 %v1133
    %1204 = vmatprep.subr.mxu0 0.0
    %1205 = vmatpush1.msra.mxu0 %v1134
    %1206 = vmatprep.subr.mxu0 0.0
    %1207 = vmatpush1.msra.mxu0 %v1135
    %1208 = vmatprep.subr.mxu0 0.0
    %1209 = vmatpush1.msra.mxu0 %v1136
    %1210 = vmatprep.subr.mxu0 0.0
    %1211 = vmatpush1.msra.mxu0 %v1137
    %1212 = vmatprep.subr.mxu0 0.0
    %1213 = vmatpush1.msra.mxu0 %v1138
    %1214 = vmatprep.subr.mxu0 0.0
    %1215 = vmatpush1.msra.mxu0 %v1139
    %1216 = vmatprep.subr.mxu0 0.0
    %1217 = vmatpush1.msra.mxu0 %v1140
    %1218 = vmatprep.subr.mxu0 0.0
    %1219 = vmatpush1.msra.mxu0 %v1141
    %1220 = vmatprep.subr.mxu0 0.0
    %1221 = vmatpush1.msra.mxu0 %v1142
    %1222 = vmatprep.subr.mxu0 0.0
    %1223 = vmatpush1.msra.mxu0 %v1143
    %1224 = vmatprep.subr.mxu0 0.0
    %1225 = vmatpush1.msra.mxu0 %v1144
    %1226 = vmatprep.subr.mxu0 0.0
    %1227 = vmatpush1.msra.mxu0 %v1145
    %1228 = vmatprep.subr.mxu0 0.0
    %1229 = vmatpush1.msra.mxu0 %v1146
    %1230 = vmatprep.subr.mxu0 0.0
    %1231 = vmatpush1.msra.mxu0 %v1147
    %1232 = vmatprep.subr.mxu0 0.0
    %1233 = vmatpush1.msra.mxu0 %v1148
    %1234 = vmatprep.subr.mxu0 0.0
    %1235 = vmatpush1.msra.mxu0 %v1149
    %1236 = vmatprep.subr.mxu0 0.0
    %1237 = vmatpush1.msra.mxu0 %v1150
    %1238 = vmatprep.mubr.f32.mxu0 %v1108
    %1239 = vmatmul.mubr.f32.gmra.mrb[0].mxu0 %v1107
    %v1240 = vpop.f32.mrb[0].mxu0
    %v1241 = vadd.f32 %v1160, %v1240
    %v1242 = vpop.f32.mrb[0].mxu0
    %1243 = vmatprep.mubr.f32.mxu0 %v1111
    %1244 = vmatmul.mubr.f32.gmra.mrb[0].mxu0 %v1110
    %v1245 = vpop.f32.mrb[0].mxu0
    %v1246 = vadd.f32 %v1160, %v1245
    %v1247 = vpop.f32.mrb[0].mxu0
    %1248 = vmatprep.mubr.f32.mxu0 %v1114
    %1249 = vmatmul.mubr.f32.gmra.mrb[0].mxu0 %v1113
    %v1250 = vpop.f32.mrb[0].mxu0
    %v1251 = vadd.f32 %v1160, %v1250
    %v1252 = vpop.f32.mrb[0].mxu0
    %1253 = vmatprep.mubr.f32.mxu0 %v1117
    %1254 = vmatmul.mubr.f32.gmra.mrb[0].mxu0 %v1116
    %v1255 = vpop.f32.mrb[0].mxu0
    %v1256 = vadd.f32 %v1160, %v1255
    %v1257 = vpop.f32.mrb[0].mxu0
    %1258 = vdwg.mxu0
    %1259 = vmatprep.subr.mxu0 0.0
    %1260 = vmatpush1.msra.mxu0 %v1151
    %1261 = vmatprep.subr.mxu0 0.0
    %1262 = vmatpush1.msra.mxu0 %v1152
    %1263 = vmatprep.subr.mxu0 0.0
    %1264 = vmatpush1.msra.mxu0 %v1153
    %1265 = vmatprep.subr.mxu0 0.0
    %1266 = vmatpush1.msra.mxu0 %v1154
    %1267 = vmatprep.subr.mxu0 0.0
    %1268 = vmatpush1.msra.mxu0 0.0
    %1269 = vmatprep.subr.mxu0 0.0
    %1270 = vmatpush1.msra.mxu0 0.0
    %1271 = vmatprep.subr.mxu0 0.0
    %1272 = vmatpush1.msra.mxu0 0.0
    %1273 = vmatprep.subr.mxu0 0.0
    %1274 = vmatpush1.msra.mxu0 0.0
    %1275 = vmatprep.subr.mxu0 0.0
    %1276 = vmatpush1.msra.mxu0 0.0
    %1277 = vmatprep.subr.mxu0 0.0
    %1278 = vmatpush1.msra.mxu0 0.0
    %1279 = vmatprep.subr.mxu0 0.0
    %1280 = vmatpush1.msra.mxu0 0.0
    %1281 = vmatprep.subr.mxu0 0.0
    %1282 = vmatpush1.msra.mxu0 0.0
    %1283 = vmatprep.subr.mxu0 0.0
    %1284 = vmatpush1.msra.mxu0 0.0
    %1285 = vmatprep.subr.mxu0 0.0
    %1286 = vmatpush1.msra.mxu0 0.0
    %1287 = vmatprep.subr.mxu0 0.0
    %1288 = vmatpush1.msra.mxu0 0.0
    %1289 = vmatprep.subr.mxu0 0.0
    %1290 = vmatpush1.msra.mxu0 0.0
    %1291 = vmatprep.subr.mxu0 0.0
    %1292 = vmatpush1.msra.mxu0 0.0
    %1293 = vmatprep.subr.mxu0 0.0
    %1294 = vmatpush1.msra.mxu0 0.0
    %1295 = vmatprep.subr.mxu0 0.0
    %1296 = vmatpush1.msra.mxu0 0.0
    %1297 = vmatprep.subr.mxu0 0.0
    %1298 = vmatpush1.msra.mxu0 0.0
    %1299 = vmatprep.subr.mxu0 0.0
    %1300 = vmatpush1.msra.mxu0 0.0
    %1301 = vmatprep.subr.mxu0 0.0
    %1302 = vmatpush1.msra.mxu0 0.0
    %1303 = vmatprep.subr.mxu0 0.0
    %1304 = vmatpush1.msra.mxu0 0.0
    %1305 = vmatprep.subr.mxu0 0.0
    %1306 = vmatpush1.msra.mxu0 0.0
    %1307 = vmatprep.subr.mxu0 0.0
    %1308 = vmatpush1.msra.mxu0 0.0
    %1309 = vmatprep.subr.mxu0 0.0
    %1310 = vmatpush1.msra.mxu0 0.0
    %1311 = vmatprep.subr.mxu0 0.0
    %1312 = vmatpush1.msra.mxu0 0.0
    %1313 = vmatprep.subr.mxu0 0.0
    %1314 = vmatpush1.msra.mxu0 0.0
    %1315 = vmatprep.subr.mxu0 0.0
    %1316 = vmatpush1.msra.mxu0 0.0
    %1317 = vmatprep.subr.mxu0 0.0
    %1318 = vmatpush1.msra.mxu0 0.0
    %1319 = vmatprep.subr.mxu0 0.0
    %1320 = vmatpush1.msra.mxu0 0.0
    %1321 = vmatprep.subr.mxu0 0.0
    %1322 = vmatpush1.msra.mxu0 0.0
    %1323 = vmatprep.mubr.f32.mxu0 0.0
    %1324 = vmatmul.mubr.f32.gmra.mrb[0].mxu0 %v1163
    %v1325 = vpop.f32.mrb[0].mxu0
    %v1326 = vadd.f32 %v1241, %v1325
    %v1327 = vpop.f32.mrb[0].mxu0
    %1328 = vmatprep.mubr.f32.mxu0 0.0
    %1329 = vmatmul.mubr.f32.gmra.mrb[0].mxu0 %v1166
    %v1330 = vpop.f32.mrb[0].mxu0
    %v1331 = vadd.f32 %v1246, %v1330
    %v1332 = vpop.f32.mrb[0].mxu0
    %1333 = vmatprep.mubr.f32.mxu0 0.0
    %1334 = vmatmul.mubr.f32.gmra.mrb[0].mxu0 %v1169
    %v1335 = vpop.f32.mrb[0].mxu0
    %v1336 = vadd.f32 %v1251, %v1335
    %v1337 = vpop.f32.mrb[0].mxu0
    %1338 = vmatprep.mubr.f32.mxu0 0.0
    %1339 = vmatmul.mubr.f32.gmra.mrb[0].mxu0 %v1172
    %v1340 = vpop.f32.mrb[0].mxu0
    %v1341 = vadd.f32 %v1256, %v1340
    %v1342 = vpop.f32.mrb[0].mxu0
    %1343 = vdwg.mxu0
    %v1344 = vmul.f32 %v1326, 0.5
    %v1345 = vmul.f32 %v1331, 0.5
    %v1346 = vmul.f32 %v1336, 0.5
    %v1347 = vmul.f32 %v1341, 0.5
    %v1348 = vmul.f32 %v1326, 0.70710677
    %v1349 = vmul.f32 %v1331, 0.70710677
    %v1350 = vmul.f32 %v1336, 0.70710677
    %v1351 = vmul.f32 %v1341, 0.70710677
    %vm1352 = vcmp.ge.f32.partialorder %v1348, 0.0
    %vm1353 = vcmp.ge.f32.partialorder %v1349, 0.0
    %vm1354 = vcmp.ge.f32.partialorder %v1350, 0.0
    %vm1355 = vcmp.ge.f32.partialorder %v1351, 0.0
    %v1356 = vsel %vm1352, 1.0, -1.0
    %v1357 = vsel %vm1353, 1.0, -1.0
    %v1358 = vsel %vm1354, 1.0, -1.0
    %v1359 = vsel %vm1355, 1.0, -1.0
    %v1360 = vand.u32 2147483647, %v1348
    %v1361 = vand.u32 2147483647, %v1349
    %v1362 = vand.u32 2147483647, %v1350
    %v1363 = vand.u32 2147483647, %v1351
    %v1364 = vmul.f32 %v1360, 0.3275911
    %v1365 = vmul.f32 %v1361, 0.3275911
    %v1366 = vmul.f32 %v1362, 0.3275911
    %v1367 = vmul.f32 %v1363, 0.3275911
    %v1368 = vadd.f32 %v1364, 1.0
    %v1369 = vadd.f32 %v1365, 1.0
    %v1370 = vadd.f32 %v1366, 1.0
    %v1371 = vadd.f32 %v1367, 1.0
    %v1372 = vrcp.pop %v1368
    %v1373 = vmul.f32 1.0, %v1372
    %v1374 = vrcp.pop %v1369
    %v1375 = vmul.f32 1.0, %v1374
    %v1376 = vrcp.pop %v1370
    %v1377 = vmul.f32 1.0, %v1376
    %v1378 = vrcp.pop %v1371
    %v1379 = vmul.f32 1.0, %v1378
    %v1380 = vmul.f32 %v1373, 1.0614054
    %v1381 = vmul.f32 %v1375, 1.0614054
    %v1382 = vmul.f32 %v1377, 1.0614054
    %v1383 = vmul.f32 %v1379, 1.0614054
    %v1384 = vadd.f32 %v1380, -1.4531521
    %v1385 = vadd.f32 %v1381, -1.4531521
    %v1386 = vadd.f32 %v1382, -1.4531521
    %v1387 = vadd.f32 %v1383, -1.4531521
    %v1388 = vmul.f32 %v1384, %v1373
    %v1389 = vmul.f32 %v1385, %v1375
    %v1390 = vmul.f32 %v1386, %v1377
    %v1391 = vmul.f32 %v1387, %v1379
    %v1392 = vadd.f32 %v1388, 1.4214138
    %v1393 = vadd.f32 %v1389, 1.4214138
    %v1394 = vadd.f32 %v1390, 1.4214138
    %v1395 = vadd.f32 %v1391, 1.4214138
    %v1396 = vmul.f32 %v1392, %v1373
    %v1397 = vmul.f32 %v1393, %v1375
    %v1398 = vmul.f32 %v1394, %v1377
    %v1399 = vmul.f32 %v1395, %v1379
    %v1400 = vadd.f32 %v1396, -0.28449672
    %v1401 = vadd.f32 %v1397, -0.28449672
    %v1402 = vadd.f32 %v1398, -0.28449672
    %v1403 = vadd.f32 %v1399, -0.28449672
    %v1404 = vmul.f32 %v1400, %v1373
    %v1405 = vmul.f32 %v1401, %v1375
    %v1406 = vmul.f32 %v1402, %v1377
    %v1407 = vmul.f32 %v1403, %v1379
    %v1408 = vadd.f32 %v1404, 0.2548296
    %v1409 = vadd.f32 %v1405, 0.2548296
    %v1410 = vadd.f32 %v1406, 0.2548296
    %v1411 = vadd.f32 %v1407, 0.2548296
    %v1412 = vmul.f32 %v1408, %v1373
    %v1413 = vmul.f32 %v1409, %v1375
    %v1414 = vmul.f32 %v1410, %v1377
    %v1415 = vmul.f32 %v1411, %v1379
    %v1416 = vsub.f32 0.0, %v1360
    %v1417 = vsub.f32 0.0, %v1361
    %v1418 = vsub.f32 0.0, %v1362
    %v1419 = vsub.f32 0.0, %v1363
    %v1420 = vmul.f32 %v1416, %v1360
    %v1421 = vmul.f32 %v1417, %v1361
    %v1422 = vmul.f32 %v1418, %v1362
    %v1423 = vmul.f32 %v1419, %v1363
    %v1424 = vmul.f32 %v1420, 1.442695
    %v1425 = vpow.pop %v1424
    %v1426 = vmul.f32 %v1421, 1.442695
    %v1427 = vpow.pop %v1426
    %v1428 = vmul.f32 %v1422, 1.442695
    %v1429 = vpow.pop %v1428
    %v1430 = vmul.f32 %v1423, 1.442695
    %v1431 = vpow.pop %v1430
    %v1432 = vmul.f32 %v1412, %v1425
    %v1433 = vmul.f32 %v1413, %v1427
    %v1434 = vmul.f32 %v1414, %v1429
    %v1435 = vmul.f32 %v1415, %v1431
    %v1436 = vsub.f32 1.0, %v1432
    %v1437 = vsub.f32 1.0, %v1433
    %v1438 = vsub.f32 1.0, %v1434
    %v1439 = vsub.f32 1.0, %v1435
    %v1440 = vmul.f32 %v1356, %v1436
    %v1441 = vmul.f32 %v1357, %v1437
    %v1442 = vmul.f32 %v1358, %v1438
    %v1443 = vmul.f32 %v1359, %v1439
    %v1444 = vadd.f32 %v1440, 1.0
    %v1445 = vadd.f32 %v1441, 1.0
    %v1446 = vadd.f32 %v1442, 1.0
    %v1447 = vadd.f32 %v1443, 1.0
    %v1448 = vmul.f32 %v1344, %v1444
    %v1449 = vmul.f32 %v1345, %v1445
    %v1450 = vmul.f32 %v1346, %v1446
    %v1451 = vmul.f32 %v1347, %v1447
    %v1452 = vld [vmem:[%s6] sm:$0xff]
    %v1453 = vld [vmem:[%s6 + $0x8] sm:$0xff]
    %v1454 = vld [vmem:[%s6 + $0x10] sm:$0xff]
    %v1455 = vld [vmem:[%s6 + $0x18] sm:$0xff]
    %v1456 = vld [vmem:[%s6 + $0x20] sm:$0xff]
    %v1457 = vld [vmem:[%s6 + $0x28] sm:$0xff]
    %v1458 = vld [vmem:[%s6 + $0x30] sm:$0xff]
    %v1459 = vld [vmem:[%s6 + $0x38] sm:$0xff]
    %v1460 = vld [vmem:[%s6 + $0x40] sm:$0xff]
    %v1462 = vsel %vm971, %v1452, 0
    %v1465 = vsel %vm971, %v1453, 0
    %v1468 = vsel %vm971, %v1454, 0
    %v1471 = vsel %vm971, %v1455, 0
    %v1474 = vsel %vm971, %v1456, 0
    %v1477 = vsel %vm971, %v1457, 0
    %v1480 = vsel %vm971, %v1458, 0
    %v1483 = vsel %vm971, %v1459, 0
    %v1486 = vsel %vm971, %v1460, 0
    %1488 = vmatprep.subr.mxu0 0.0
    %1489 = vmatpush1.msra.mxu0 %v1448
    %1490 = vmatprep.subr.mxu0 0.0
    %1491 = vmatpush1.msra.mxu0 %v1449
    %1492 = vmatprep.subr.mxu0 0.0
    %1493 = vmatpush1.msra.mxu0 %v1450
    %1494 = vmatprep.subr.mxu0 0.0
    %1495 = vmatpush1.msra.mxu0 %v1451
    %1496 = vmatprep.subr.mxu0 0.0
    %1497 = vmatpush1.msra.mxu0 0.0
    %1498 = vmatprep.subr.mxu0 0.0
    %1499 = vmatpush1.msra.mxu0 0.0
    %1500 = vmatprep.subr.mxu0 0.0
    %1501 = vmatpush1.msra.mxu0 0.0
    %1502 = vmatprep.subr.mxu0 0.0
    %1503 = vmatpush1.msra.mxu0 0.0
    %1504 = vmatprep.subr.mxu0 0.0
    %1505 = vmatpush1.msra.mxu0 0.0
    %1506 = vmatprep.subr.mxu0 0.0
    %1507 = vmatpush1.msra.mxu0 0.0
    %1508 = vmatprep.subr.mxu0 0.0
    %1509 = vmatpush1.msra.mxu0 0.0
    %1510 = vmatprep.subr.mxu0 0.0
    %1511 = vmatpush1.msra.mxu0 0.0
    %1512 = vmatprep.subr.mxu0 0.0
    %1513 = vmatpush1.msra.mxu0 0.0
    %1514 = vmatprep.subr.mxu0 0.0
    %1515 = vmatpush1.msra.mxu0 0.0
    %1516 = vmatprep.subr.mxu0 0.0
    %1517 = vmatpush1.msra.mxu0 0.0
    %1518 = vmatprep.subr.mxu0 0.0
    %1519 = vmatpush1.msra.mxu0 0.0
    %1520 = vmatprep.subr.mxu0 0.0
    %1521 = vmatpush1.msra.mxu0 0.0
    %1522 = vmatprep.subr.mxu0 0.0
    %1523 = vmatpush1.msra.mxu0 0.0
    %1524 = vmatprep.subr.mxu0 0.0
    %1525 = vmatpush1.msra.mxu0 0.0
    %1526 = vmatprep.subr.mxu0 0.0
    %1527 = vmatpush1.msra.mxu0 0.0
    %1528 = vmatprep.subr.mxu0 0.0
    %1529 = vmatpush1.msra.mxu0 0.0
    %1530 = vmatprep.subr.mxu0 0.0
    %1531 = vmatpush1.msra.mxu0 0.0
    %1532 = vmatprep.subr.mxu0 0.0
    %1533 = vmatpush1.msra.mxu0 0.0
    %1534 = vmatprep.subr.mxu0 0.0
    %1535 = vmatpush1.msra.mxu0 0.0
    %1536 = vmatprep.subr.mxu0 0.0
    %1537 = vmatpush1.msra.mxu0 0.0
    %1538 = vmatprep.subr.mxu0 0.0
    %1539 = vmatpush1.msra.mxu0 0.0
    %1540 = vmatprep.subr.mxu0 0.0
    %1541 = vmatpush1.msra.mxu0 0.0
    %1542 = vmatprep.subr.mxu0 0.0
    %1543 = vmatpush1.msra.mxu0 0.0
    %1544 = vmatprep.subr.mxu0 0.0
    %1545 = vmatpush1.msra.mxu0 0.0
    %1546 = vmatprep.subr.mxu0 0.0
    %1547 = vmatpush1.msra.mxu0 0.0
    %1548 = vmatprep.subr.mxu0 0.0
    %1549 = vmatpush1.msra.mxu0 0.0
    %1550 = vmatprep.subr.mxu0 0.0
    %1551 = vmatpush1.msra.mxu0 0.0
    %1552 = vmatprep.mubr.f32.mxu0 0.0
    %1553 = vmatmul.mubr.f32.gmra.mrb[0].mxu0 %v1462
    %v1554 = vpop.f32.mrb[0].mxu0
    %v1555 = vadd.f32 0.0, %v1554
    %v1556 = vpop.f32.mrb[0].mxu0
    %1557 = vmatprep.mubr.f32.mxu0 0.0
    %1558 = vmatmul.mubr.f32.gmra.mrb[0].mxu0 %v1465
    %v1559 = vpop.f32.mrb[0].mxu0
    %v1560 = vadd.f32 0.0, %v1559
    %v1561 = vpop.f32.mrb[0].mxu0
    %1562 = vmatprep.mubr.f32.mxu0 0.0
    %1563 = vmatmul.mubr.f32.gmra.mrb[0].mxu0 %v1468
    %v1564 = vpop.f32.mrb[0].mxu0
    %v1565 = vadd.f32 0.0, %v1564
    %v1566 = vpop.f32.mrb[0].mxu0
    %1567 = vmatprep.mubr.f32.mxu0 0.0
    %1568 = vmatmul.mubr.f32.gmra.mrb[0].mxu0 %v1471
    %v1569 = vpop.f32.mrb[0].mxu0
    %v1570 = vadd.f32 0.0, %v1569
    %v1571 = vpop.f32.mrb[0].mxu0
    %1572 = vmatprep.mubr.f32.mxu0 0.0
    %1573 = vmatmul.mubr.f32.gmra.mrb[0].mxu0 %v1474
    %v1574 = vpop.f32.mrb[0].mxu0
    %v1575 = vadd.f32 0.0, %v1574
    %v1576 = vpop.f32.mrb[0].mxu0
    %1577 = vmatprep.mubr.f32.mxu0 0.0
    %1578 = vmatmul.mubr.f32.gmra.mrb[0].mxu0 %v1477
    %v1579 = vpop.f32.mrb[0].mxu0
    %v1580 = vadd.f32 0.0, %v1579
    %v1581 = vpop.f32.mrb[0].mxu0
    %1582 = vmatprep.mubr.f32.mxu0 0.0
    %1583 = vmatmul.mubr.f32.gmra.mrb[0].mxu0 %v1480
    %v1584 = vpop.f32.mrb[0].mxu0
    %v1585 = vadd.f32 0.0, %v1584
    %v1586 = vpop.f32.mrb[0].mxu0
    %1587 = vmatprep.mubr.f32.mxu0 0.0
    %1588 = vmatmul.mubr.f32.gmra.mrb[0].mxu0 %v1483
    %v1589 = vpop.f32.mrb[0].mxu0
    %v1590 = vadd.f32 0.0, %v1589
    %v1591 = vpop.f32.mrb[0].mxu0
    %1592 = vmatprep.mubr.f32.mxu0 0.0
    %1593 = vmatmul.mubr.f32.gmra.mrb[0].mxu0 %v1486
    %v1594 = vpop.f32.mrb[0].mxu0
    %v1595 = vadd.f32 0.0, %v1594
    %v1596 = vpop.f32.mrb[0].mxu0
    %1597 = vdwg.mxu0
    %vm1598 = vcmask 523264
    %1599 = vst.msk [vmem:[#allocation3] sm:$0xff] %vm1598, %v1555
    %1601 = vrot.lane.b32.xlu0 %v1560, 64
    %v1602 = vpop.permute.xlu0 %1601
    %vm1604 = vcmask 1048064
    %1605 = vst.msk [vmem:[#allocation3] sm:$0xff] %vm1604, %v1602
    %1606 = vst.msk [vmem:[#allocation3 + $0x8] sm:$0xff] %vm1598, %v1565
    %1608 = vrot.lane.b32.xlu0 %v1570, 64
    %v1609 = vpop.permute.xlu0 %1608
    %1611 = vst.msk [vmem:[#allocation3 + $0x8] sm:$0xff] %vm1604, %v1609
    %1612 = vst.msk [vmem:[#allocation3 + $0x10] sm:$0xff] %vm1598, %v1575
    %1614 = vrot.lane.b32.xlu0 %v1580, 64
    %v1615 = vpop.permute.xlu0 %1614
    %1617 = vst.msk [vmem:[#allocation3 + $0x10] sm:$0xff] %vm1604, %v1615
    %1618 = vst.msk [vmem:[#allocation3 + $0x18] sm:$0xff] %vm1598, %v1585
    %1620 = vrot.lane.b32.xlu0 %v1590, 64
    %v1621 = vpop.permute.xlu0 %1620
    %1623 = vst.msk [vmem:[#allocation3 + $0x18] sm:$0xff] %vm1604, %v1621
    %1624 = vst.msk [vmem:[#allocation3 + $0x20] sm:$0xff] %vm1598, %v1595
    %v1625 = vld [vmem:[#allocation3] sm:$0xff]
    %v1626 = vld [vmem:[#allocation3 + $0x8] sm:$0xff]
    %v1627 = vld [vmem:[#allocation3 + $0x10] sm:$0xff]
    %v1628 = vld [vmem:[#allocation3 + $0x18] sm:$0xff]
    %v1629 = vld [vmem:[#allocation3 + $0x20] sm:$0xff]
    %v1630 = vld [vmem:[%s7] sm:$0xff]
    %v1631 = vld [vmem:[%s7 + $0x8] sm:$0xff]
    %v1632 = vld [vmem:[%s7 + $0x10] sm:$0xff]
    %v1633 = vld [vmem:[%s7 + $0x18] sm:$0xff]
    %v1634 = vld [vmem:[%s7 + $0x20] sm:$0xff]
    %v1635 = vld [vmem:[%s7 + $0x28] sm:$0xff]
    %v1636 = vld [vmem:[%s7 + $0x30] sm:$0xff]
    %v1637 = vld [vmem:[%s7 + $0x38] sm:$0xff]
    %v1638 = vld [vmem:[%s7 + $0x40] sm:$0xff]
    %v1639 = vld [vmem:[%s7 + $0x48] sm:$0xff]
    %v1640 = vld [vmem:[%s7 + $0x50] sm:$0xff]
    %v1641 = vld [vmem:[%s7 + $0x58] sm:$0xff]
    %v1642 = vld [vmem:[%s7 + $0x60] sm:$0xff]
    %v1643 = vld [vmem:[%s7 + $0x68] sm:$0xff]
    %v1644 = vld [vmem:[%s7 + $0x70] sm:$0xff]
    %v1645 = vld [vmem:[%s7 + $0x78] sm:$0xff]
    %v1646 = vld [vmem:[%s7 + $0x80] sm:$0xff]
    %v1647 = vld [vmem:[%s7 + $0x88] sm:$0xff]
    %v1648 = vld [vmem:[%s7 + $0x90] sm:$0xff]
    %v1649 = vld [vmem:[%s7 + $0x98] sm:$0xff]
    %v1650 = vld [vmem:[%s7 + $0xa0] sm:$0xff]
    %v1651 = vld [vmem:[%s7 + $0xa8] sm:$0xff]
    %v1652 = vld [vmem:[%s7 + $0xb0] sm:$0xff]
    %v1653 = vld [vmem:[%s7 + $0xb8] sm:$0xff]
    %v1654 = vld [vmem:[%s7 + $0xc0] sm:$0xff]
    %v1655 = vld [vmem:[%s7 + $0xc8] sm:$0xff]
    %v1656 = vld [vmem:[%s7 + $0xd0] sm:$0xff]
    %v1657 = vld [vmem:[%s7 + $0xd8] sm:$0xff]
    %v1658 = vld [vmem:[%s7 + $0xe0] sm:$0xff]
    %v1659 = vld [vmem:[%s7 + $0xe8] sm:$0xff]
    %v1660 = vld [vmem:[%s7 + $0xf0] sm:$0xff]
    %v1661 = vld [vmem:[%s7 + $0xf8] sm:$0xff]
    %v1662 = vld [vmem:[%s7 + $0x100] sm:$0xff]
    %v1663 = vld [vmem:[%s7 + $0x108] sm:$0xff]
    %v1664 = vld [vmem:[%s7 + $0x110] sm:$0xff]
    %v1665 = vld [vmem:[%s7 + $0x118] sm:$0xff]
    %v1666 = vld [vmem:[%s7 + $0x120] sm:$0xff]
    %v1667 = vld [vmem:[%s7 + $0x128] sm:$0xff]
    %v1668 = vld [vmem:[%s7 + $0x130] sm:$0xff]
    %v1669 = vld [vmem:[%s7 + $0x138] sm:$0xff]
    %v1670 = vld [vmem:[%s7 + $0x140] sm:$0xff]
    %v1671 = vld [vmem:[%s7 + $0x148] sm:$0xff]
    %v1672 = vld [vmem:[%s7 + $0x150] sm:$0xff]
    %v1673 = vld [vmem:[%s7 + $0x158] sm:$0xff]
    %v1674 = vld [vmem:[%s7 + $0x160] sm:$0xff]
    %v1675 = vld [vmem:[%s7 + $0x168] sm:$0xff]
    %v1676 = vld [vmem:[%s7 + $0x170] sm:$0xff]
    %v1677 = vld [vmem:[%s7 + $0x178] sm:$0xff]
    %v1678 = vld [vmem:[%s7 + $0x180] sm:$0xff]
    %v1679 = vld [vmem:[%s7 + $0x188] sm:$0xff]
    %v1680 = vld [vmem:[%s7 + $0x190] sm:$0xff]
    %v1681 = vld [vmem:[%s7 + $0x198] sm:$0xff]
    %v1682 = vld [vmem:[%s7 + $0x1a0] sm:$0xff]
    %v1683 = vld [vmem:[%s7 + $0x1a8] sm:$0xff]
    %v1684 = vld [vmem:[%s7 + $0x1b0] sm:$0xff]
    %v1685 = vld [vmem:[%s7 + $0x1b8] sm:$0xff]
    %v1686 = vld [vmem:[%s7 + $0x1c0] sm:$0xff]
    %v1687 = vld [vmem:[%s7 + $0x1c8] sm:$0xff]
    %v1688 = vld [vmem:[%s7 + $0x1d0] sm:$0xff]
    %v1689 = vld [vmem:[%s7 + $0x1d8] sm:$0xff]
    %v1690 = vld [vmem:[%s7 + $0x1e0] sm:$0xff]
    %v1691 = vld [vmem:[%s7 + $0x1e8] sm:$0xff]
    %v1692 = vld [vmem:[%s7 + $0x1f0] sm:$0xff]
    %v1693 = vld [vmem:[%s7 + $0x1f8] sm:$0xff]
    %v1694 = vld [vmem:[%s7 + $0x200] sm:$0xff]
    %v1695 = vld [vmem:[%s7 + $0x208] sm:$0xff]
    %v1696 = vld [vmem:[%s7 + $0x210] sm:$0xff]
    %v1697 = vld [vmem:[%s7 + $0x218] sm:$0xff]
    %v1698 = vld [vmem:[%s7 + $0x220] sm:$0xff]
    %v1699 = vld [vmem:[%s7 + $0x228] sm:$0xff]
    %v1700 = vld [vmem:[%s7 + $0x230] sm:$0xff]
    %v1701 = vld [vmem:[%s7 + $0x238] sm:$0xff]
    %v1702 = vld [vmem:[%s8] sm:$0x1]
    %v1704 = vlaneseq
    %v1705 = vshrl.u32 %v1704, 7
    %v1706 = vsub.s32 0, %v1705
    %v1707 = vrot.slane %v1702, %v1706
    %v1710 = vsel %vm1598, %v1629, 0
    %1712 = vmatprep.subr.mxu0 0.0
    %1713 = vmatpush1.msra.mxu0 %v1630
    %1714 = vmatprep.subr.mxu0 0.0
    %1715 = vmatpush1.msra.mxu0 %v1631
    %1716 = vmatprep.subr.mxu0 0.0
    %1717 = vmatpush1.msra.mxu0 %v1632
    %1718 = vmatprep.subr.mxu0 0.0
    %1719 = vmatpush1.msra.mxu0 %v1633
    %1720 = vmatprep.subr.mxu0 0.0
    %1721 = vmatpush1.msra.mxu0 %v1634
    %1722 = vmatprep.subr.mxu0 0.0
    %1723 = vmatpush1.msra.mxu0 %v1635
    %1724 = vmatprep.subr.mxu0 0.0
    %1725 = vmatpush1.msra.mxu0 %v1636
    %1726 = vmatprep.subr.mxu0 0.0
    %1727 = vmatpush1.msra.mxu0 %v1637
    %1728 = vmatprep.subr.mxu0 0.0
    %1729 = vmatpush1.msra.mxu0 %v1638
    %1730 = vmatprep.subr.mxu0 0.0
    %1731 = vmatpush1.msra.mxu0 %v1639
    %1732 = vmatprep.subr.mxu0 0.0
    %1733 = vmatpush1.msra.mxu0 %v1640
    %1734 = vmatprep.subr.mxu0 0.0
    %1735 = vmatpush1.msra.mxu0 %v1641
    %1736 = vmatprep.subr.mxu0 0.0
    %1737 = vmatpush1.msra.mxu0 %v1642
    %1738 = vmatprep.subr.mxu0 0.0
    %1739 = vmatpush1.msra.mxu0 %v1643
    %1740 = vmatprep.subr.mxu0 0.0
    %1741 = vmatpush1.msra.mxu0 %v1644
    %1742 = vmatprep.subr.mxu0 0.0
    %1743 = vmatpush1.msra.mxu0 %v1645
    %1744 = vmatprep.subr.mxu0 0.0
    %1745 = vmatpush1.msra.mxu0 %v1646
    %1746 = vmatprep.subr.mxu0 0.0
    %1747 = vmatpush1.msra.mxu0 %v1647
    %1748 = vmatprep.subr.mxu0 0.0
    %1749 = vmatpush1.msra.mxu0 %v1648
    %1750 = vmatprep.subr.mxu0 0.0
    %1751 = vmatpush1.msra.mxu0 %v1649
    %1752 = vmatprep.subr.mxu0 0.0
    %1753 = vmatpush1.msra.mxu0 %v1650
    %1754 = vmatprep.subr.mxu0 0.0
    %1755 = vmatpush1.msra.mxu0 %v1651
    %1756 = vmatprep.subr.mxu0 0.0
    %1757 = vmatpush1.msra.mxu0 %v1652
    %1758 = vmatprep.subr.mxu0 0.0
    %1759 = vmatpush1.msra.mxu0 %v1653
    %1760 = vmatprep.subr.mxu0 0.0
    %1761 = vmatpush1.msra.mxu0 %v1654
    %1762 = vmatprep.subr.mxu0 0.0
    %1763 = vmatpush1.msra.mxu0 %v1655
    %1764 = vmatprep.subr.mxu0 0.0
    %1765 = vmatpush1.msra.mxu0 %v1656
    %1766 = vmatprep.subr.mxu0 0.0
    %1767 = vmatpush1.msra.mxu0 %v1657
    %1768 = vmatprep.subr.mxu0 0.0
    %1769 = vmatpush1.msra.mxu0 %v1658
    %1770 = vmatprep.subr.mxu0 0.0
    %1771 = vmatpush1.msra.mxu0 %v1659
    %1772 = vmatprep.subr.mxu0 0.0
    %1773 = vmatpush1.msra.mxu0 %v1660
    %1774 = vmatprep.subr.mxu0 0.0
    %1775 = vmatpush1.msra.mxu0 %v1661
    %1776 = vmatprep.mubr.f32.mxu0 %v1626
    %1777 = vmatmul.mubr.f32.gmra.mrb[0].mxu0 %v1625
    %v1778 = vpop.f32.mrb[0].mxu0
    %v1779 = vadd.f32 %v1707, %v1778
    %v1780 = vpop.f32.mrb[0].mxu0
    %1781 = vdwg.mxu0
    %1782 = vmatprep.subr.mxu0 0.0
    %1783 = vmatpush1.msra.mxu0 %v1662
    %1784 = vmatprep.subr.mxu0 0.0
    %1785 = vmatpush1.msra.mxu0 %v1663
    %1786 = vmatprep.subr.mxu0 0.0
    %1787 = vmatpush1.msra.mxu0 %v1664
    %1788 = vmatprep.subr.mxu0 0.0
    %1789 = vmatpush1.msra.mxu0 %v1665
    %1790 = vmatprep.subr.mxu0 0.0
    %1791 = vmatpush1.msra.mxu0 %v1666
    %1792 = vmatprep.subr.mxu0 0.0
    %1793 = vmatpush1.msra.mxu0 %v1667
    %1794 = vmatprep.subr.mxu0 0.0
    %1795 = vmatpush1.msra.mxu0 %v1668
    %1796 = vmatprep.subr.mxu0 0.0
    %1797 = vmatpush1.msra.mxu0 %v1669
    %1798 = vmatprep.subr.mxu0 0.0
    %1799 = vmatpush1.msra.mxu0 %v1670
    %1800 = vmatprep.subr.mxu0 0.0
    %1801 = vmatpush1.msra.mxu0 %v1671
    %1802 = vmatprep.subr.mxu0 0.0
    %1803 = vmatpush1.msra.mxu0 %v1672
    %1804 = vmatprep.subr.mxu0 0.0
    %1805 = vmatpush1.msra.mxu0 %v1673
    %1806 = vmatprep.subr.mxu0 0.0
    %1807 = vmatpush1.msra.mxu0 %v1674
    %1808 = vmatprep.subr.mxu0 0.0
    %1809 = vmatpush1.msra.mxu0 %v1675
    %1810 = vmatprep.subr.mxu0 0.0
    %1811 = vmatpush1.msra.mxu0 %v1676
    %1812 = vmatprep.subr.mxu0 0.0
    %1813 = vmatpush1.msra.mxu0 %v1677
    %1814 = vmatprep.subr.mxu0 0.0
    %1815 = vmatpush1.msra.mxu0 %v1678
    %1816 = vmatprep.subr.mxu0 0.0
    %1817 = vmatpush1.msra.mxu0 %v1679
    %1818 = vmatprep.subr.mxu0 0.0
    %1819 = vmatpush1.msra.mxu0 %v1680
    %1820 = vmatprep.subr.mxu0 0.0
    %1821 = vmatpush1.msra.mxu0 %v1681
    %1822 = vmatprep.subr.mxu0 0.0
    %1823 = vmatpush1.msra.mxu0 %v1682
    %1824 = vmatprep.subr.mxu0 0.0
    %1825 = vmatpush1.msra.mxu0 %v1683
    %1826 = vmatprep.subr.mxu0 0.0
    %1827 = vmatpush1.msra.mxu0 %v1684
    %1828 = vmatprep.subr.mxu0 0.0
    %1829 = vmatpush1.msra.mxu0 %v1685
    %1830 = vmatprep.subr.mxu0 0.0
    %1831 = vmatpush1.msra.mxu0 %v1686
    %1832 = vmatprep.subr.mxu0 0.0
    %1833 = vmatpush1.msra.mxu0 %v1687
    %1834 = vmatprep.subr.mxu0 0.0
    %1835 = vmatpush1.msra.mxu0 %v1688
    %1836 = vmatprep.subr.mxu0 0.0
    %1837 = vmatpush1.msra.mxu0 %v1689
    %1838 = vmatprep.subr.mxu0 0.0
    %1839 = vmatpush1.msra.mxu0 %v1690
    %1840 = vmatprep.subr.mxu0 0.0
    %1841 = vmatpush1.msra.mxu0 %v1691
    %1842 = vmatprep.subr.mxu0 0.0
    %1843 = vmatpush1.msra.mxu0 %v1692
    %1844 = vmatprep.subr.mxu0 0.0
    %1845 = vmatpush1.msra.mxu0 %v1693
    %1846 = vmatprep.mubr.f32.mxu0 %v1628
    %1847 = vmatmul.mubr.f32.gmra.mrb[0].mxu0 %v1627
    %v1848 = vpop.f32.mrb[0].mxu0
    %v1849 = vadd.f32 %v1779, %v1848
    %v1850 = vpop.f32.mrb[0].mxu0
    %1851 = vdwg.mxu0
    %1852 = vmatprep.subr.mxu0 0.0
    %1853 = vmatpush1.msra.mxu0 %v1694
    %1854 = vmatprep.subr.mxu0 0.0
    %1855 = vmatpush1.msra.mxu0 %v1695
    %1856 = vmatprep.subr.mxu0 0.0
    %1857 = vmatpush1.msra.mxu0 %v1696
    %1858 = vmatprep.subr.mxu0 0.0
    %1859 = vmatpush1.msra.mxu0 %v1697
    %1860 = vmatprep.subr.mxu0 0.0
    %1861 = vmatpush1.msra.mxu0 %v1698
    %1862 = vmatprep.subr.mxu0 0.0
    %1863 = vmatpush1.msra.mxu0 %v1699
    %1864 = vmatprep.subr.mxu0 0.0
    %1865 = vmatpush1.msra.mxu0 %v1700
    %1866 = vmatprep.subr.mxu0 0.0
    %1867 = vmatpush1.msra.mxu0 %v1701
    %1868 = vmatprep.subr.mxu0 0.0
    %1869 = vmatpush1.msra.mxu0 0.0
    %1870 = vmatprep.subr.mxu0 0.0
    %1871 = vmatpush1.msra.mxu0 0.0
    %1872 = vmatprep.subr.mxu0 0.0
    %1873 = vmatpush1.msra.mxu0 0.0
    %1874 = vmatprep.subr.mxu0 0.0
    %1875 = vmatpush1.msra.mxu0 0.0
    %1876 = vmatprep.subr.mxu0 0.0
    %1877 = vmatpush1.msra.mxu0 0.0
    %1878 = vmatprep.subr.mxu0 0.0
    %1879 = vmatpush1.msra.mxu0 0.0
    %1880 = vmatprep.subr.mxu0 0.0
    %1881 = vmatpush1.msra.mxu0 0.0
    %1882 = vmatprep.subr.mxu0 0.0
    %1883 = vmatpush1.msra.mxu0 0.0
    %1884 = vmatprep.subr.mxu0 0.0
    %1885 = vmatpush1.msra.mxu0 0.0
    %1886 = vmatprep.subr.mxu0 0.0
    %1887 = vmatpush1.msra.mxu0 0.0
    %1888 = vmatprep.subr.mxu0 0.0
    %1889 = vmatpush1.msra.mxu0 0.0
    %1890 = vmatprep.subr.mxu0 0.0
    %1891 = vmatpush1.msra.mxu0 0.0
    %1892 = vmatprep.subr.mxu0 0.0
    %1893 = vmatpush1.msra.mxu0 0.0
    %1894 = vmatprep.subr.mxu0 0.0
    %1895 = vmatpush1.msra.mxu0 0.0
    %1896 = vmatprep.subr.mxu0 0.0
    %1897 = vmatpush1.msra.mxu0 0.0
    %1898 = vmatprep.subr.mxu0 0.0
    %1899 = vmatpush1.msra.mxu0 0.0
    %1900 = vmatprep.subr.mxu0 0.0
    %1901 = vmatpush1.msra.mxu0 0.0
    %1902 = vmatprep.subr.mxu0 0.0
    %1903 = vmatpush1.msra.mxu0 0.0
    %1904 = vmatprep.subr.mxu0 0.0
    %1905 = vmatpush1.msra.mxu0 0.0
    %1906 = vmatprep.subr.mxu0 0.0
    %1907 = vmatpush1.msra.mxu0 0.0
    %1908 = vmatprep.subr.mxu0 0.0
    %1909 = vmatpush1.msra.mxu0 0.0
    %1910 = vmatprep.subr.mxu0 0.0
    %1911 = vmatpush1.msra.mxu0 0.0
    %1912 = vmatprep.subr.mxu0 0.0
    %1913 = vmatpush1.msra.mxu0 0.0
    %1914 = vmatprep.subr.mxu0 0.0
    %1915 = vmatpush1.msra.mxu0 0.0
    %1916 = vmatprep.mubr.f32.mxu0 0.0
    %1917 = vmatmul.mubr.f32.gmra.mrb[0].mxu0 %v1710
    %v1918 = vpop.f32.mrb[0].mxu0
    %v1919 = vadd.f32 %v1849, %v1918
    %v1920 = vpop.f32.mrb[0].mxu0
    %1921 = vdwg.mxu0
    %1922 = vst [vmem:[#allocation4] sm:$0xff] %v1919
    // Predicated region
    $region38: #{discriminator_forward.1} parent=1 // pred_check
      _
    $region39: #{discriminator_forward.1} parent=1 // pred_check_branch
      %1924 = sbr.rel (0) target = $region41
    $region40: #{discriminator_forward.1} parent=1 // pred_region
      %s1926 = ssub.s32 128, 128
      %1927 = vsyncadd [#allocation5], %s1926
      %s1929 = sshll.u32 [#allocation4], 4
      %s1930 = int_to_ptr.vmem [resolvable:$true] %s1929
      %1932 = dma.vmem_to_hbm [thread:$0]  %s1930, 128, %s9, [#allocation5]
    $region41: #{discriminator_forward.1} parent=1 // pred_fallthru
      _
    // Predicated region
    $region42: #{discriminator_forward.1} parent=1 // pred_check
      _
    $region43: #{discriminator_forward.1} parent=1 // pred_check_branch
      %1934 = sbr.rel (0) target = $region45
    $region44: #{discriminator_forward.1} parent=1 // pred_region
      %1935 = dma.done [#allocation5], 128
    $region45: #{discriminator_forward.1} parent=1 // pred_fallthru
      _
    %1936 = vsyncpa [#allocation5], 1

</llo_original>
